<compile_context>
chip_gen: v6e
topology: v6e:2x2x1
jax: 0.10.0
libtpu: 0.0.40
codegen_flags: <defaults>
</compile_context>

<pallas_src>
import jax
import jax.numpy as jnp
from jax import lax
from jax.experimental import pallas as pl
from jax.experimental.pallas import tpu as pltpu

_LANE = 128


def _round_up(x, m):
    return ((x + m - 1) // m) * m


def _cdiv(a, b):
    return -(-a // b)


def _phi(af):
    if af == "relu":
        return lambda u: jnp.maximum(u, 0.0)
    if af == "tanh":
        return jnp.tanh
    if af == "linear":
        return lambda u: u
    raise ValueError("No valid activation function.")


def _vmem_capacity_bytes():
    try:
        info = pltpu.get_tpu_info()
        cap = getattr(info, "vmem_capacity_bytes", None)
        if cap:
            return int(cap)
    except Exception:
        pass
    return 128 << 20  # v5e/v6e default


def _make_kernel(B_t, T_c, V, V_pad, F_pad, af, mxu_dtype, unroll):
    phi = _phi(af)
    split = V_pad < F_pad  # the input term only touches the first V_pad columns

    def kernel(x_ref, wt_ref, lam_ref, oml_ref, lamb_ref, wrow_ref, brow_ref,
               out_ref, r_ref):
        ti = pl.program_id(1)
        n_t = pl.num_programs(1)

        # New batch tile -> reset the recurrent-state scratch. Relies on the
        # time axis being the innermost grid axis.
        @pl.when(ti == 0)
        def _init():
            r_ref[...] = jnp.zeros_like(r_ref)

        Wt = wt_ref[...]                # (F_pad, F_pad) mxu_dtype, padded W^T
        Lam = lam_ref[...][None]        # (1, V, F_pad) f32
        LamB = lamb_ref[...][None]      # (1, V, F_pad) f32 == Lambda * b
        OmLv = oml_ref[...][None]       # (1, V, V_pad) f32 == (1-Lambda)[:, :V_pad]

        def step(t, R):
            # R: (B_t, V, F_pad) carried in mxu_dtype (bf16 by default).
            xt = x_ref[t].astype(jnp.float32)                  # (B_t, V_pad)
            WR = jnp.dot(R.reshape(B_t * V, F_pad), Wt,
                         preferred_element_type=jnp.float32,
                         ).reshape(B_t, V, F_pad)
            U = Lam * WR + LamB
            xterm = OmLv * xt[:, None, :]
            if split:
                # (1-Lambda) == 0 on hidden/padded columns, so only the first
                # V_pad columns receive the input contribution.
                U = jnp.concatenate(
                    [U[:, :, :V_pad] + xterm, U[:, :, V_pad:]], axis=-1)
            else:
                U = U + xterm
            # TODO(synk): on v6e/v7x the elementwise chain + tanh could run in
            # bf16 (2x VALU/EUP density); kept f32 for accuracy parity.
            return phi(U).astype(mxu_dtype)

        # TODO(synk): weight-stationary MXU driving (matmul_push_rhs once per
        # grid step + matmul_acc_lhs per time step) would avoid re-streaming Wt
        # through the MXU every step.
        R = lax.fori_loop(0, T_c - 1, step, r_ref[...], unroll=unroll)

        # Non-final time chunk: one more full step, carry the state.
        @pl.when(ti < n_t - 1)
        def _carry():
            r_ref[...] = step(T_c - 1, R)

        # Final time chunk: output = diag(U_T[:, :, :V]). Because the module
        # forces Lambda[i, i] == 1, U_T[b,i,i] = sum_f R[b,i,f]*W[i,f] + b[i],
        # so the last step needs no matmul / activation / state store.
        @pl.when(ti == n_t - 1)
        def _finalize():
            Rf = R.astype(jnp.float32)
            d = jnp.sum(Rf * wrow_ref[...][None], axis=-1)     # (B_t, V)
            # TODO(synk): pack into a lane-dense (., 128k) slab to avoid the
            # masked store for V < 128; negligible at these output sizes.
            out_ref[...] = d + brow_ref[...]

    return kernel


def _vmem_needed(t_chunk, b_tile, V, V_pad, F_pad, mxu_bytes, x_bytes):
    x_blk = t_chunk * b_tile * V_pad * x_bytes          # streamed X block
    wt_blk = F_pad * F_pad * mxu_bytes                  # weights (W^T)
    small = (3 * V * F_pad + V * V_pad + V) * 4         # Lam, LamB, Wrow, OmL, brow
    out_blk = b_tile * V * 4
    r_bytes = b_tile * V * F_pad * mxu_bytes            # persistent state scratch
    work = 6 * b_tile * V * F_pad * 4                   # live per-step temporaries
    # Inputs/outputs are double-buffered by the auto pipeline.
    # TODO(synk): grid-invariant inputs (Wt/Lam/...) could be single-buffered
    # via pipeline_mode=pl.Buffered(1) to halve their footprint.
    return 2 * (x_blk + wt_blk + small + out_blk) + r_bytes + work


def general_rnn_pallas(X, W, b, Lam, *, af="tanh", t_chunk=None,
                       rows_target=256, mxu_dtype=jnp.bfloat16):
    """X: (B, T, V); W: (F, F); b: (F,); Lam: (V, F). Returns (B, V) f32.

    mxu_dtype=bfloat16 (default) feeds the MXU and carries R in bf16 with f32
    accumulation; pass jnp.float32 for tight-tolerance accuracy.
    rows_target ~ MXU rows per step (256 for v6e/v7x; 512 would suit v5e).
    """
    B, T, V = X.shape
    F = W.shape[0]
    V_pad = _round_up(V, _LANE)
    F_pad = _round_up(F, _LANE)
    mxu_bytes = jnp.dtype(mxu_dtype).itemsize
    x_dtype = jnp.float32 if mxu_dtype == jnp.float32 else jnp.bfloat16
    x_bytes = jnp.dtype(x_dtype).itemsize

    # ---- generation-aware VMEM budget ----
    vmem_cap = _vmem_capacity_bytes()
    budget = int(vmem_cap * 0.85)   # headroom for compiler scratch (v7x: 64 MiB total)

    # ---- batch tile: feed the MXU, but keep >= 2 tiles for v7x's 2nd core ----
    b_tile = _round_up(max(1, _cdiv(rows_target, V)), 8)
    if 2 * b_tile > B:
        b_tile = _round_up(max(1, _cdiv(B, 2)), 8) if B >= 2 else 8

    # ---- time-chunk candidates (divisors of T, largest first, capped at 64) ----
    if t_chunk is not None:
        if T % int(t_chunk) != 0:
            raise ValueError("t_chunk must divide T")
        t_cands = [int(t_chunk)]
    else:
        t_cands = [c for c in range(min(T, 64), 0, -1) if T % c == 0]

    # ---- first-fit tile search against the VMEM budget ----
    chosen = None
    bt = b_tile
    while chosen is None:
        for tc in t_cands:
            if _vmem_needed(tc, bt, V, V_pad, F_pad, mxu_bytes, x_bytes) <= budget:
                chosen = (bt, tc)
                break
        if chosen is None:
            if bt <= 8:
                need = _vmem_needed(t_cands[-1], 8, V, V_pad, F_pad,
                                    mxu_bytes, x_bytes)
                raise ValueError(
                    f"GeneralRNN Pallas tiles do not fit in VMEM: need >= {need} "
                    f"bytes even at b_tile=8, t_chunk={t_cands[-1]}; budget is "
                    f"{budget} bytes (capacity {vmem_cap}). Reduce visible/"
                    f"hidden size or t_chunk.")
            bt = max(8, _round_up(bt // 2, 8))
    b_tile, t_chunk = chosen

    n_b = max(2, _cdiv(B, b_tile)) if B >= 2 else _cdiv(B, b_tile)
    B_pad = n_b * b_tile
    n_t = T // t_chunk
    trip = t_chunk - 1
    unroll = True if trip <= 8 else 8

    needed = _vmem_needed(t_chunk, b_tile, V, V_pad, F_pad, mxu_bytes, x_bytes)
    vmem_limit = int(min(max(needed + (8 << 20), 32 << 20), budget))

    # ---- loop-invariant precompute (hoisted out of the kernel entirely) ----
    Wf = W.astype(jnp.float32)
    Lamf = Lam.astype(jnp.float32)
    bf = b.astype(jnp.float32)
    Wt = jnp.zeros((F_pad, F_pad), jnp.float32).at[:F, :F].set(Wf.T).astype(mxu_dtype)
    Lam_p = jnp.zeros((V, F_pad), jnp.float32).at[:, :F].set(Lamf)
    b_p = jnp.zeros((F_pad,), jnp.float32).at[:F].set(bf)
    LamB = Lam_p * b_p[None, :]                               # bias folded into Lambda*b
    OmL_v = jnp.zeros((V, V_pad), jnp.float32).at[:, :V].set(1.0 - Lamf[:, :V])
    Wrow_p = jnp.zeros((V, F_pad), jnp.float32).at[:, :F].set(Wf[:V, :])
    brow_p = jnp.zeros((1, V), jnp.float32).at[0, :].set(bf[:V])

    # Time-major, visible-only, lane-padded input stream:
    # X_p[t, b, :V] = X[b, t, :]; padded batch rows / lanes are zero.
    X_p = jnp.zeros((T, B_pad, V_pad), x_dtype).at[:, :B, :V].set(
        jnp.transpose(X, (1, 0, 2)).astype(x_dtype))

    kernel = _make_kernel(b_tile, t_chunk, V, V_pad, F_pad, af, mxu_dtype, unroll)

    out = pl.pallas_call(
        kernel,
        out_shape=jax.ShapeDtypeStruct((B_pad, V), jnp.float32),
        grid_spec=pltpu.PrefetchScalarGridSpec(
            num_scalar_prefetch=0,
            grid=(n_b, n_t),
            in_specs=[
                pl.BlockSpec((t_chunk, b_tile, V_pad), lambda bi, ti: (ti, bi, 0)),
                pl.BlockSpec((F_pad, F_pad), lambda bi, ti: (0, 0)),
                pl.BlockSpec((V, F_pad), lambda bi, ti: (0, 0)),
                pl.BlockSpec((V, V_pad), lambda bi, ti: (0, 0)),
                pl.BlockSpec((V, F_pad), lambda bi, ti: (0, 0)),
                pl.BlockSpec((V, F_pad), lambda bi, ti: (0, 0)),
                pl.BlockSpec((1, V), lambda bi, ti: (0, 0)),
            ],
            out_specs=pl.BlockSpec((b_tile, V), lambda bi, ti: (bi, 0)),
            scratch_shapes=[pltpu.VMEM((b_tile, V, F_pad), mxu_dtype)],
        ),
        compiler_params=pltpu.CompilerParams(
            dimension_semantics=("parallel", "arbitrary"),
            vmem_limit_bytes=vmem_limit,
        ),
    )(X_p, Wt, Lam_p, OmL_v, LamB, Wrow_p, brow_p)

    return out[:B, :V]


def general_rnn_ref(X, W, b, Lam, *, af="tanh"):
    """Pure-JAX reference mirroring the PyTorch forward exactly."""
    B, T, V = X.shape
    F = W.shape[0]
    H = F - V
    phi = _phi(af)
    R = jnp.zeros((B, V, F), jnp.float32)
    U = jnp.zeros((B, V, F), jnp.float32)
    for t in range(T):
        Yv = jnp.broadcast_to(X[:, t, :][:, None, :], (B, V, V))
        Y = jnp.concatenate([Yv, jnp.zeros((B, V, H), jnp.float32)], axis=-1)
        WR = jnp.einsum("bvf,gf->bvg", R, W) + b
        U = Lam[None] * WR + (1.0 - Lam[None]) * Y
        R = phi(U)
    return jnp.diagonal(U[:, :, :V], axis1=-2, axis2=-1)


if __name__ == "__main__":
    # Module hyper-parameters (synthetic, deterministic).
    params = dict(hidden_size=4, visible_size=4, bias=True, af="tanh")
    lam = 0.5
    B, T = 2, 8
    V = params["visible_size"]
    H = params["hidden_size"]
    F = V + H

    key = jax.random.PRNGKey(0)
    kx, kw, kb = jax.random.split(key, 3)

    W = jax.random.normal(kw, (F, F), dtype=jnp.float32) * 0.3
    b = jax.random.normal(kb, (F,), dtype=jnp.float32) * 0.1

    # Lambda: [V, F]; first V columns = lambda, remaining H columns = 1,
    # with the diagonal of the visible block forced to 1.
    Lam = jnp.concatenate(
        [jnp.ones((V, V), jnp.float32) * lam, jnp.ones((V, H), jnp.float32)],
        axis=1,
    )
    Lam = Lam.at[jnp.arange(V), jnp.arange(V)].set(1.0)

    X = jax.random.normal(kx, (B, T, V), dtype=jnp.float32)

    ref = general_rnn_ref(X, W, b, Lam, af=params["af"])

    # Default perf path: bf16 MXU operands + bf16 state carry, auto tiles
    # (grid = (>=2 batch tiles "parallel", time chunks "arbitrary")).
    out = jax.block_until_ready(general_rnn_pallas(X, W, b, Lam, af=params["af"]))
    assert out.shape == (B, V)
    assert jnp.allclose(out, ref, atol=5e-2, rtol=5e-2), (out, ref)

    # Accuracy escape hatch: f32 MXU/carry, explicit t_chunk=4 -> grid (n_b, 2)
    # to exercise the cross-chunk state carry in the persistent VMEM scratch.
    out32 = jax.block_until_ready(
        general_rnn_pallas(X, W, b, Lam, af=params["af"], t_chunk=4,
                           mxu_dtype=jnp.float32))
    assert out32.shape == (B, V)
    assert jnp.allclose(out32, ref, atol=1e-5, rtol=1e-5), (out32, ref)

    print("KERNEL_OK")
</pallas_src>

<mosaic_0001>
module attributes {stable_mosaic.version = 11 : i64} {
  func.func @kernel(%arg0: i32, %arg1: i32, %arg2: memref<8x8x128xbf16, #tpu.memory_space<vmem>>, %arg3: memref<128x128xbf16, #tpu.memory_space<vmem>>, %arg4: memref<4x128xf32, #tpu.memory_space<vmem>>, %arg5: memref<4x128xf32, #tpu.memory_space<vmem>>, %arg6: memref<4x128xf32, #tpu.memory_space<vmem>>, %arg7: memref<4x128xf32, #tpu.memory_space<vmem>>, %arg8: memref<1x4xf32, #tpu.memory_space<vmem>>, %arg9: memref<8x4xf32, #tpu.memory_space<vmem>>, %arg10: memref<8x4x128xbf16, #tpu.memory_space<vmem>>) attributes {dimension_semantics = [#tpu.dimension_semantics<parallel>, #tpu.dimension_semantics<arbitrary>], iteration_bounds = array<i64: 2, 1>, scalar_prefetch = 0 : i64, scratch_operands = 1 : i64, tpu.core_type = #tpu.core_type<tc>, window_params = [{transform_indices = @transform_0, window_bounds = array<i64: 8, 8, 128>}, {pipeline_mode = #tpu.pipeline_mode<synchronous>, transform_indices = @transform_1, window_bounds = array<i64: 128, 128>}, {pipeline_mode = #tpu.pipeline_mode<synchronous>, transform_indices = @transform_2, window_bounds = array<i64: 4, 128>}, {pipeline_mode = #tpu.pipeline_mode<synchronous>, transform_indices = @transform_3, window_bounds = array<i64: 4, 128>}, {pipeline_mode = #tpu.pipeline_mode<synchronous>, transform_indices = @transform_4, window_bounds = array<i64: 4, 128>}, {pipeline_mode = #tpu.pipeline_mode<synchronous>, transform_indices = @transform_5, window_bounds = array<i64: 4, 128>}, {pipeline_mode = #tpu.pipeline_mode<synchronous>, transform_indices = @transform_6, window_bounds = array<i64: 1, 4>}, {transform_indices = @transform_7, window_bounds = array<i64: 8, 4>}]} {
    %c0_i32 = arith.constant 0 : i32
    %0 = arith.cmpi eq, %arg1, %c0_i32 : i32
    %1 = arith.extui %0 : i1 to i32
    %c0_i32_0 = arith.constant 0 : i32
    %2 = arith.cmpi ne, %1, %c0_i32_0 : i32
    scf.if %2 {
      %cst_36 = arith.constant 0.000000e+00 : bf16
      %143 = vector.broadcast %cst_36 : bf16 to vector<8x4x128xbf16>
      %c0_37 = arith.constant 0 : index
      %c0_38 = arith.constant 0 : index
      %c0_39 = arith.constant 0 : index
      %144 = vector.load %arg10[%c0_37, %c0_38, %c0_39] : memref<8x4x128xbf16, #tpu.memory_space<vmem>>, vector<8x4x128xbf16>
      tpu.vector_store %arg10[%c0_37, %c0_38, %c0_39], %143 {strides = array<i32>} : memref<8x4x128xbf16, #tpu.memory_space<vmem>>, vector<8x4x128xbf16>,
    } else {
    }
    %c0 = arith.constant 0 : index
    %c0_1 = arith.constant 0 : index
    %3 = vector.load %arg3[%c0, %c0_1] : memref<128x128xbf16, #tpu.memory_space<vmem>>, vector<128x128xbf16>
    %c0_2 = arith.constant 0 : index
    %c0_3 = arith.constant 0 : index
    %4 = vector.load %arg4[%c0_2, %c0_3] : memref<4x128xf32, #tpu.memory_space<vmem>>, vector<4x128xf32>
    %5 = vector.shape_cast %4 : vector<4x128xf32> to vector<1x4x128xf32>
    %c0_4 = arith.constant 0 : index
    %c0_5 = arith.constant 0 : index
    %6 = vector.load %arg6[%c0_4, %c0_5] : memref<4x128xf32, #tpu.memory_space<vmem>>, vector<4x128xf32>
    %7 = vector.shape_cast %6 : vector<4x128xf32> to vector<1x4x128xf32>
    %c0_6 = arith.constant 0 : index
    %c0_7 = arith.constant 0 : index
    %8 = vector.load %arg5[%c0_6, %c0_7] : memref<4x128xf32, #tpu.memory_space<vmem>>, vector<4x128xf32>
    %9 = vector.shape_cast %8 : vector<4x128xf32> to vector<1x4x128xf32>
    %c0_8 = arith.constant 0 : index
    %c0_9 = arith.constant 0 : index
    %c0_10 = arith.constant 0 : index
    %10 = vector.load %arg10[%c0_8, %c0_9, %c0_10] : memref<8x4x128xbf16, #tpu.memory_space<vmem>>, vector<8x4x128xbf16>
    %c0_i32_11 = arith.constant 0 : i32
    %11 = arith.index_cast %c0_i32_11 : i32 to index
    %c0_12 = arith.constant 0 : index
    %c0_13 = arith.constant 0 : index
    %12 = vector.load %arg2[%11, %c0_12, %c0_13] : memref<8x8x128xbf16, #tpu.memory_space<vmem>>, vector<1x8x128xbf16>
    %13 = vector.shape_cast %12 : vector<1x8x128xbf16> to vector<8x128xbf16>
    %14 = arith.extf %13 : vector<8x128xbf16> to vector<8x128xf32>
    %15 = vector.shape_cast %10 : vector<8x4x128xbf16> to vector<32x128xbf16>
    %cst = arith.constant dense<0.000000e+00> : vector<32x128xf32>
    %16 = tpu.matmul %15, %3, %cst {dimension_numbers = #tpu.dot_dimension_numbers<[1], [0], [0], [1], [0, 0, 1, 1], [], []>} : vector<32x128xbf16>, vector<128x128xbf16>, vector<32x128xf32> -> vector<32x128xf32>
    %17 = vector.shape_cast %16 : vector<32x128xf32> to vector<8x4x128xf32>
    %18 = vector.broadcast %5 : vector<1x4x128xf32> to vector<8x4x128xf32>
    %19 = arith.mulf %18, %17 : vector<8x4x128xf32>
    %20 = vector.broadcast %7 : vector<1x4x128xf32> to vector<8x4x128xf32>
    %21 = arith.addf %19, %20 : vector<8x4x128xf32>
    %22 = vector.shape_cast %14 : vector<8x128xf32> to vector<8x1x128xf32>
    %23 = vector.broadcast %9 : vector<1x4x128xf32> to vector<8x4x128xf32>
    %24 = vector.broadcast %22 : vector<8x1x128xf32> to vector<8x4x128xf32>
    %25 = arith.mulf %23, %24 : vector<8x4x128xf32>
    %26 = arith.addf %21, %25 : vector<8x4x128xf32>
    %27 = math.tanh %26 : vector<8x4x128xf32>
    %28 = arith.truncf %27 : vector<8x4x128xf32> to vector<8x4x128xbf16>
    %c1_i32 = arith.constant 1 : i32
    %29 = arith.index_cast %c1_i32 : i32 to index
    %c0_14 = arith.constant 0 : index
    %c0_15 = arith.constant 0 : index
    %30 = vector.load %arg2[%29, %c0_14, %c0_15] : memref<8x8x128xbf16, #tpu.memory_space<vmem>>, vector<1x8x128xbf16>
    %31 = vector.shape_cast %30 : vector<1x8x128xbf16> to vector<8x128xbf16>
    %32 = arith.extf %31 : vector<8x128xbf16> to vector<8x128xf32>
    %33 = vector.shape_cast %28 : vector<8x4x128xbf16> to vector<32x128xbf16>
    %cst_16 = arith.constant dense<0.000000e+00> : vector<32x128xf32>
    %34 = tpu.matmul %33, %3, %cst_16 {dimension_numbers = #tpu.dot_dimension_numbers<[1], [0], [0], [1], [0, 0, 1, 1], [], []>} : vector<32x128xbf16>, vector<128x128xbf16>, vector<32x128xf32> -> vector<32x128xf32>
    %35 = vector.shape_cast %34 : vector<32x128xf32> to vector<8x4x128xf32>
    %36 = vector.broadcast %5 : vector<1x4x128xf32> to vector<8x4x128xf32>
    %37 = arith.mulf %36, %35 : vector<8x4x128xf32>
    %38 = vector.broadcast %7 : vector<1x4x128xf32> to vector<8x4x128xf32>
    %39 = arith.addf %37, %38 : vector<8x4x128xf32>
    %40 = vector.shape_cast %32 : vector<8x128xf32> to vector<8x1x128xf32>
    %41 = vector.broadcast %9 : vector<1x4x128xf32> to vector<8x4x128xf32>
    %42 = vector.broadcast %40 : vector<8x1x128xf32> to vector<8x4x128xf32>
    %43 = arith.mulf %41, %42 : vector<8x4x128xf32>
    %44 = arith.addf %39, %43 : vector<8x4x128xf32>
    %45 = math.tanh %44 : vector<8x4x128xf32>
    %46 = arith.truncf %45 : vector<8x4x128xf32> to vector<8x4x128xbf16>
    %c2_i32 = arith.constant 2 : i32
    %47 = arith.index_cast %c2_i32 : i32 to index
    %c0_17 = arith.constant 0 : index
    %c0_18 = arith.constant 0 : index
    %48 = vector.load %arg2[%47, %c0_17, %c0_18] : memref<8x8x128xbf16, #tpu.memory_space<vmem>>, vector<1x8x128xbf16>
    %49 = vector.shape_cast %48 : vector<1x8x128xbf16> to vector<8x128xbf16>
    %50 = arith.extf %49 : vector<8x128xbf16> to vector<8x128xf32>
    %51 = vector.shape_cast %46 : vector<8x4x128xbf16> to vector<32x128xbf16>
    %cst_19 = arith.constant dense<0.000000e+00> : vector<32x128xf32>
    %52 = tpu.matmul %51, %3, %cst_19 {dimension_numbers = #tpu.dot_dimension_numbers<[1], [0], [0], [1], [0, 0, 1, 1], [], []>} : vector<32x128xbf16>, vector<128x128xbf16>, vector<32x128xf32> -> vector<32x128xf32>
    %53 = vector.shape_cast %52 : vector<32x128xf32> to vector<8x4x128xf32>
    %54 = vector.broadcast %5 : vector<1x4x128xf32> to vector<8x4x128xf32>
    %55 = arith.mulf %54, %53 : vector<8x4x128xf32>
    %56 = vector.broadcast %7 : vector<1x4x128xf32> to vector<8x4x128xf32>
    %57 = arith.addf %55, %56 : vector<8x4x128xf32>
    %58 = vector.shape_cast %50 : vector<8x128xf32> to vector<8x1x128xf32>
    %59 = vector.broadcast %9 : vector<1x4x128xf32> to vector<8x4x128xf32>
    %60 = vector.broadcast %58 : vector<8x1x128xf32> to vector<8x4x128xf32>
    %61 = arith.mulf %59, %60 : vector<8x4x128xf32>
    %62 = arith.addf %57, %61 : vector<8x4x128xf32>
    %63 = math.tanh %62 : vector<8x4x128xf32>
    %64 = arith.truncf %63 : vector<8x4x128xf32> to vector<8x4x128xbf16>
    %c3_i32 = arith.constant 3 : i32
    %65 = arith.index_cast %c3_i32 : i32 to index
    %c0_20 = arith.constant 0 : index
    %c0_21 = arith.constant 0 : index
    %66 = vector.load %arg2[%65, %c0_20, %c0_21] : memref<8x8x128xbf16, #tpu.memory_space<vmem>>, vector<1x8x128xbf16>
    %67 = vector.shape_cast %66 : vector<1x8x128xbf16> to vector<8x128xbf16>
    %68 = arith.extf %67 : vector<8x128xbf16> to vector<8x128xf32>
    %69 = vector.shape_cast %64 : vector<8x4x128xbf16> to vector<32x128xbf16>
    %cst_22 = arith.constant dense<0.000000e+00> : vector<32x128xf32>
    %70 = tpu.matmul %69, %3, %cst_22 {dimension_numbers = #tpu.dot_dimension_numbers<[1], [0], [0], [1], [0, 0, 1, 1], [], []>} : vector<32x128xbf16>, vector<128x128xbf16>, vector<32x128xf32> -> vector<32x128xf32>
    %71 = vector.shape_cast %70 : vector<32x128xf32> to vector<8x4x128xf32>
    %72 = vector.broadcast %5 : vector<1x4x128xf32> to vector<8x4x128xf32>
    %73 = arith.mulf %72, %71 : vector<8x4x128xf32>
    %74 = vector.broadcast %7 : vector<1x4x128xf32> to vector<8x4x128xf32>
    %75 = arith.addf %73, %74 : vector<8x4x128xf32>
    %76 = vector.shape_cast %68 : vector<8x128xf32> to vector<8x1x128xf32>
    %77 = vector.broadcast %9 : vector<1x4x128xf32> to vector<8x4x128xf32>
    %78 = vector.broadcast %76 : vector<8x1x128xf32> to vector<8x4x128xf32>
    %79 = arith.mulf %77, %78 : vector<8x4x128xf32>
    %80 = arith.addf %75, %79 : vector<8x4x128xf32>
    %81 = math.tanh %80 : vector<8x4x128xf32>
    %82 = arith.truncf %81 : vector<8x4x128xf32> to vector<8x4x128xbf16>
    %c4_i32 = arith.constant 4 : i32
    %83 = arith.index_cast %c4_i32 : i32 to index
    %c0_23 = arith.constant 0 : index
    %c0_24 = arith.constant 0 : index
    %84 = vector.load %arg2[%83, %c0_23, %c0_24] : memref<8x8x128xbf16, #tpu.memory_space<vmem>>, vector<1x8x128xbf16>
    %85 = vector.shape_cast %84 : vector<1x8x128xbf16> to vector<8x128xbf16>
    %86 = arith.extf %85 : vector<8x128xbf16> to vector<8x128xf32>
    %87 = vector.shape_cast %82 : vector<8x4x128xbf16> to vector<32x128xbf16>
    %cst_25 = arith.constant dense<0.000000e+00> : vector<32x128xf32>
    %88 = tpu.matmul %87, %3, %cst_25 {dimension_numbers = #tpu.dot_dimension_numbers<[1], [0], [0], [1], [0, 0, 1, 1], [], []>} : vector<32x128xbf16>, vector<128x128xbf16>, vector<32x128xf32> -> vector<32x128xf32>
    %89 = vector.shape_cast %88 : vector<32x128xf32> to vector<8x4x128xf32>
    %90 = vector.broadcast %5 : vector<1x4x128xf32> to vector<8x4x128xf32>
    %91 = arith.mulf %90, %89 : vector<8x4x128xf32>
    %92 = vector.broadcast %7 : vector<1x4x128xf32> to vector<8x4x128xf32>
    %93 = arith.addf %91, %92 : vector<8x4x128xf32>
    %94 = vector.shape_cast %86 : vector<8x128xf32> to vector<8x1x128xf32>
    %95 = vector.broadcast %9 : vector<1x4x128xf32> to vector<8x4x128xf32>
    %96 = vector.broadcast %94 : vector<8x1x128xf32> to vector<8x4x128xf32>
    %97 = arith.mulf %95, %96 : vector<8x4x128xf32>
    %98 = arith.addf %93, %97 : vector<8x4x128xf32>
    %99 = math.tanh %98 : vector<8x4x128xf32>
    %100 = arith.truncf %99 : vector<8x4x128xf32> to vector<8x4x128xbf16>
    %c5_i32 = arith.constant 5 : i32
    %101 = arith.index_cast %c5_i32 : i32 to index
    %c0_26 = arith.constant 0 : index
    %c0_27 = arith.constant 0 : index
    %102 = vector.load %arg2[%101, %c0_26, %c0_27] : memref<8x8x128xbf16, #tpu.memory_space<vmem>>, vector<1x8x128xbf16>
    %103 = vector.shape_cast %102 : vector<1x8x128xbf16> to vector<8x128xbf16>
    %104 = arith.extf %103 : vector<8x128xbf16> to vector<8x128xf32>
    %105 = vector.shape_cast %100 : vector<8x4x128xbf16> to vector<32x128xbf16>
    %cst_28 = arith.constant dense<0.000000e+00> : vector<32x128xf32>
    %106 = tpu.matmul %105, %3, %cst_28 {dimension_numbers = #tpu.dot_dimension_numbers<[1], [0], [0], [1], [0, 0, 1, 1], [], []>} : vector<32x128xbf16>, vector<128x128xbf16>, vector<32x128xf32> -> vector<32x128xf32>
    %107 = vector.shape_cast %106 : vector<32x128xf32> to vector<8x4x128xf32>
    %108 = vector.broadcast %5 : vector<1x4x128xf32> to vector<8x4x128xf32>
    %109 = arith.mulf %108, %107 : vector<8x4x128xf32>
    %110 = vector.broadcast %7 : vector<1x4x128xf32> to vector<8x4x128xf32>
    %111 = arith.addf %109, %110 : vector<8x4x128xf32>
    %112 = vector.shape_cast %104 : vector<8x128xf32> to vector<8x1x128xf32>
    %113 = vector.broadcast %9 : vector<1x4x128xf32> to vector<8x4x128xf32>
    %114 = vector.broadcast %112 : vector<8x1x128xf32> to vector<8x4x128xf32>
    %115 = arith.mulf %113, %114 : vector<8x4x128xf32>
    %116 = arith.addf %111, %115 : vector<8x4x128xf32>
    %117 = math.tanh %116 : vector<8x4x128xf32>
    %118 = arith.truncf %117 : vector<8x4x128xf32> to vector<8x4x128xbf16>
    %c6_i32 = arith.constant 6 : i32
    %119 = arith.index_cast %c6_i32 : i32 to index
    %c0_29 = arith.constant 0 : index
    %c0_30 = arith.constant 0 : index
    %120 = vector.load %arg2[%119, %c0_29, %c0_30] : memref<8x8x128xbf16, #tpu.memory_space<vmem>>, vector<1x8x128xbf16>
    %121 = vector.shape_cast %120 : vector<1x8x128xbf16> to vector<8x128xbf16>
    %122 = arith.extf %121 : vector<8x128xbf16> to vector<8x128xf32>
    %123 = vector.shape_cast %118 : vector<8x4x128xbf16> to vector<32x128xbf16>
    %cst_31 = arith.constant dense<0.000000e+00> : vector<32x128xf32>
    %124 = tpu.matmul %123, %3, %cst_31 {dimension_numbers = #tpu.dot_dimension_numbers<[1], [0], [0], [1], [0, 0, 1, 1], [], []>} : vector<32x128xbf16>, vector<128x128xbf16>, vector<32x128xf32> -> vector<32x128xf32>
    %125 = vector.shape_cast %124 : vector<32x128xf32> to vector<8x4x128xf32>
    %126 = vector.broadcast %5 : vector<1x4x128xf32> to vector<8x4x128xf32>
    %127 = arith.mulf %126, %125 : vector<8x4x128xf32>
    %128 = vector.broadcast %7 : vector<1x4x128xf32> to vector<8x4x128xf32>
    %129 = arith.addf %127, %128 : vector<8x4x128xf32>
    %130 = vector.shape_cast %122 : vector<8x128xf32> to vector<8x1x128xf32>
    %131 = vector.broadcast %9 : vector<1x4x128xf32> to vector<8x4x128xf32>
    %132 = vector.broadcast %130 : vector<8x1x128xf32> to vector<8x4x128xf32>
    %133 = arith.mulf %131, %132 : vector<8x4x128xf32>
    %134 = arith.addf %129, %133 : vector<8x4x128xf32>
    %135 = math.tanh %134 : vector<8x4x128xf32>
    %136 = arith.truncf %135 : vector<8x4x128xf32> to vector<8x4x128xbf16>
    %c7_i32 = arith.constant 7 : i32
    %c0_i32_32 = arith.constant 0 : i32
    %137 = arith.cmpi slt, %arg1, %c0_i32_32 : i32
    %138 = arith.extui %137 : i1 to i32
    %c0_i32_33 = arith.constant 0 : i32
    %139 = arith.cmpi ne, %138, %c0_i32_33 : i32
    scf.if %139 {
      %c7 = arith.constant 7 : index
      %c0_36 = arith.constant 0 : index
      %c0_37 = arith.constant 0 : index
      %143 = vector.load %arg2[%c7, %c0_36, %c0_37] : memref<8x8x128xbf16, #tpu.memory_space<vmem>>, vector<1x8x128xbf16>
      %144 = vector.shape_cast %143 : vector<1x8x128xbf16> to vector<8x128xbf16>
      %145 = arith.extf %144 : vector<8x128xbf16> to vector<8x128xf32>
      %146 = vector.shape_cast %136 : vector<8x4x128xbf16> to vector<32x128xbf16>
      %cst_38 = arith.constant dense<0.000000e+00> : vector<32x128xf32>
      %147 = tpu.matmul %146, %3, %cst_38 {dimension_numbers = #tpu.dot_dimension_numbers<[1], [0], [0], [1], [0, 0, 1, 1], [], []>} : vector<32x128xbf16>, vector<128x128xbf16>, vector<32x128xf32> -> vector<32x128xf32>
      %148 = vector.shape_cast %147 : vector<32x128xf32> to vector<8x4x128xf32>
      %149 = vector.broadcast %5 : vector<1x4x128xf32> to vector<8x4x128xf32>
      %150 = arith.mulf %149, %148 : vector<8x4x128xf32>
      %151 = vector.broadcast %7 : vector<1x4x128xf32> to vector<8x4x128xf32>
      %152 = arith.addf %150, %151 : vector<8x4x128xf32>
      %153 = vector.shape_cast %145 : vector<8x128xf32> to vector<8x1x128xf32>
      %154 = vector.broadcast %9 : vector<1x4x128xf32> to vector<8x4x128xf32>
      %155 = vector.broadcast %153 : vector<8x1x128xf32> to vector<8x4x128xf32>
      %156 = arith.mulf %154, %155 : vector<8x4x128xf32>
      %157 = arith.addf %152, %156 : vector<8x4x128xf32>
      %158 = math.tanh %157 : vector<8x4x128xf32>
      %159 = arith.truncf %158 : vector<8x4x128xf32> to vector<8x4x128xbf16>
      %c0_39 = arith.constant 0 : index
      %c0_40 = arith.constant 0 : index
      %c0_41 = arith.constant 0 : index
      %160 = vector.load %arg10[%c0_39, %c0_40, %c0_41] : memref<8x4x128xbf16, #tpu.memory_space<vmem>>, vector<8x4x128xbf16>
      tpu.vector_store %arg10[%c0_39, %c0_40, %c0_41], %159 {strides = array<i32>} : memref<8x4x128xbf16, #tpu.memory_space<vmem>>, vector<8x4x128xbf16>,
    } else {
    }
    %c0_i32_34 = arith.constant 0 : i32
    %140 = arith.cmpi eq, %arg1, %c0_i32_34 : i32
    %141 = arith.extui %140 : i1 to i32
    %c0_i32_35 = arith.constant 0 : i32
    %142 = arith.cmpi ne, %141, %c0_i32_35 : i32
    scf.if %142 {
      %143 = arith.extf %136 : vector<8x4x128xbf16> to vector<8x4x128xf32>
      %c0_36 = arith.constant 0 : index
      %c0_37 = arith.constant 0 : index
      %144 = vector.load %arg7[%c0_36, %c0_37] : memref<4x128xf32, #tpu.memory_space<vmem>>, vector<4x128xf32>
      %145 = vector.shape_cast %144 : vector<4x128xf32> to vector<1x4x128xf32>
      %146 = vector.broadcast %145 : vector<1x4x128xf32> to vector<8x4x128xf32>
      %147 = arith.mulf %143, %146 : vector<8x4x128xf32>
      %cst_38 = arith.constant dense<0.000000e+00> : vector<8x4xf32>
      %148 = vector.multi_reduction <add>, %147, %cst_38 [2] : vector<8x4x128xf32> to vector<8x4xf32>
      %c0_39 = arith.constant 0 : index
      %c0_40 = arith.constant 0 : index
      %149 = vector.load %arg8[%c0_39, %c0_40] : memref<1x4xf32, #tpu.memory_space<vmem>>, vector<1x4xf32>
      %150 = vector.broadcast %149 : vector<1x4xf32> to vector<8x4xf32>
      %151 = arith.addf %148, %150 : vector<8x4xf32>
      %c0_41 = arith.constant 0 : index
      %c0_42 = arith.constant 0 : index
      %152 = vector.load %arg9[%c0_41, %c0_42] : memref<8x4xf32, #tpu.memory_space<vmem>>, vector<8x4xf32>
      tpu.vector_store %arg9[%c0_41, %c0_42], %151 {strides = array<i32>} : memref<8x4xf32, #tpu.memory_space<vmem>>, vector<8x4xf32>,
    } else {
    }
    return
  }
  func.func @transform_0(%arg0: i32, %arg1: i32) -> (i32, i32, i32) {
    %c0_i32 = arith.constant 0 : i32
    %c0_i32_0 = arith.constant 0 : i32
    return %arg1, %arg0, %c0_i32 : i32, i32, i32
  }
  func.func @transform_1(%arg0: i32, %arg1: i32) -> (i32, i32) {
    %c0_i32 = arith.constant 0 : i32
    %c0_i32_0 = arith.constant 0 : i32
    %c0_i32_1 = arith.constant 0 : i32
    return %c0_i32, %c0_i32_0 : i32, i32
  }
  func.func @transform_2(%arg0: i32, %arg1: i32) -> (i32, i32) {
    %c0_i32 = arith.constant 0 : i32
    %c0_i32_0 = arith.constant 0 : i32
    %c0_i32_1 = arith.constant 0 : i32
    return %c0_i32, %c0_i32_0 : i32, i32
  }
  func.func @transform_3(%arg0: i32, %arg1: i32) -> (i32, i32) {
    %c0_i32 = arith.constant 0 : i32
    %c0_i32_0 = arith.constant 0 : i32
    %c0_i32_1 = arith.constant 0 : i32
    return %c0_i32, %c0_i32_0 : i32, i32
  }
  func.func @transform_4(%arg0: i32, %arg1: i32) -> (i32, i32) {
    %c0_i32 = arith.constant 0 : i32
    %c0_i32_0 = arith.constant 0 : i32
    %c0_i32_1 = arith.constant 0 : i32
    return %c0_i32, %c0_i32_0 : i32, i32
  }
  func.func @transform_5(%arg0: i32, %arg1: i32) -> (i32, i32) {
    %c0_i32 = arith.constant 0 : i32
    %c0_i32_0 = arith.constant 0 : i32
    %c0_i32_1 = arith.constant 0 : i32
    return %c0_i32, %c0_i32_0 : i32, i32
  }
  func.func @transform_6(%arg0: i32, %arg1: i32) -> (i32, i32) {
    %c0_i32 = arith.constant 0 : i32
    %c0_i32_0 = arith.constant 0 : i32
    %c0_i32_1 = arith.constant 0 : i32
    return %c0_i32, %c0_i32_0 : i32, i32
  }
  func.func @transform_7(%arg0: i32, %arg1: i32) -> (i32, i32) {
    %c0_i32 = arith.constant 0 : i32
    %c0_i32_0 = arith.constant 0 : i32
    return %arg0, %c0_i32 : i32, i32
  }
}

</mosaic_0001>

<llo_original>
// kernel: tpu_custom_call.1
$region0: #{tpu_custom_call.1}
  #allocation0 [shape = 'u32[]', space=smem, size = 0x4, offset = 0x4, fixed_abs, tag = 'smem constant byte address 0x4 - core index']
  #allocation1 [shape = 'u32[144,128]{1,0:T(1,128)}', space=vmem, size = 0x12000, scoped, tag = 'internal scratch']
  #allocation2 [shape = 'bf16[8,4,128]{2,1,0:T(4,128)(2,1)}', space=vmem, size = 0x2000, scoped, tag = 'scratch operand']
  %s0 = inlined_call_operand.hbm [shape: bf16[8,16,128], index: 0, kind: input, shape index: {}]
  %s1 = inlined_call_operand.hbm [shape: bf16[128,128], index: 1, kind: input, shape index: {}]
  %s2 = inlined_call_operand.hbm [shape: f32[4,128], index: 2, kind: input, shape index: {}]
  %s3 = inlined_call_operand.vmem [shape: f32[4,128], index: 3, kind: input, shape index: {}]
  %s4 = inlined_call_operand.hbm [shape: f32[4,128], index: 4, kind: input, shape index: {}]
  %s5 = inlined_call_operand.vmem [shape: f32[4,128], index: 5, kind: input, shape index: {}]
  %s6 = inlined_call_operand.vmem [shape: f32[1,4], index: 6, kind: input, shape index: {}]
  %s7 = inlined_call_operand.vmem [shape: f32[16,4], index: 7, kind: output, shape index: {}]
  %s8 = sld [smem:[#allocation0]]
  $region89: #{tpu_custom_call.1} parent=0
    _
  %s10 = ssub.s32 1, %s8
  %s11 = scalar_select 0, %s10, %s8
  $region1: #{tpu_custom_call.1} parent=0
    #allocation3 [shape = 'u8[32768]{0}', space=vmem, size = 0x8000, scoped, tag = 'input window, operand 0']
    #allocation4 [shape = 's32[2]{0}', space=sflag, size = 0x8, scoped, tag = 'scoped memory for tpu_custom_call.1']
    #allocation5 [shape = 'u8[32768]{0}', space=vmem, size = 0x8000, scoped, tag = 'input window, operand 1, single buffered']
    #allocation6 [shape = 's32[1]{0}', space=sflag, size = 0x4, scoped, tag = 'scoped memory for tpu_custom_call.1']
    #allocation7 [shape = 'u8[2048]{0}', space=vmem, size = 0x800, scoped, tag = 'input window, operand 2, single buffered']
    #allocation8 [shape = 'u8[2048]{0}', space=vmem, size = 0x800, scoped, tag = 'input window, operand 4, single buffered']
    #allocation9 [shape = 's32[1]{0}', space=sflag, size = 0x4, scoped, tag = 'scoped memory for tpu_custom_call.1']
    %12 = vsyncpa [#allocation4], 0
    %s13 = scalar_lea.sflag [#allocation4], 1
    %14 = vsyncpa %s13, 0
    %15 = vsyncpa [#allocation6], 0
    %16 = vsyncpa [#allocation9], 0
    loop: start=0, step=1, limit=4
    $region2: #{tpu_custom_call.1} parent=1 // loop_pre_header
      _
    $region3: #{tpu_custom_call.1} parent=1 // loop_header
      %s18 = sphi 0, %s22
      %p19 = scmp.ge.s32.totalorder %s18, 4
      %s25 = sphi 0, %s37
      %s26 = sphi 0, %s33
      %s27 = sphi 0, %s25
      %s28 = sphi 0, %s26
      %s29 = sphi 0, %s27
      %s30 = sphi 0, %s28
      %s42 = sphi 0, %s44
      %s45 = sphi 0, %s42
      %s46 = sphi 0, %s45
      %s62 = sphi 0, %s46
      %s66 = sphi 0, %s66
      %s68 = sphi 0, %s66
      %s69 = sphi 0, %s68
      %s83 = sphi 0, %s69
      %s87 = sphi 0, %s87
      %s89 = sphi 0, %s87
      %s90 = sphi 0, %s89
      %s104 = sphi 0, %s90
      %s108 = sphi 0, %s108
      %s110 = sphi 0, %s108
      %s111 = sphi 0, %s110
      %s125 = sphi 0, %s111
      %s129 = sphi 0, %s129
      %s131 = sphi 0, %s129
      %s132 = sphi 0, %s131
      %s146 = sphi 0, %s132
      %s150 = sphi 0, %s150
      %s152 = sphi 0, %s150
      %s153 = sphi 0, %s152
      %s167 = sphi 0, %s153
      %s171 = sphi 0, %s171
      %s173 = sphi 0, %s171
      %s174 = sphi 0, %s173
      %s188 = sphi 0, %s174
      %s194 = sphi 0, %s196
      %s197 = sphi 0, %s194
      %s198 = sphi 0, %s197
      %s214 = sphi 0, %s198
    $region4: #{tpu_custom_call.1} parent=1 // loop_header_branch
      %21 = sbr.rel (%p19) target = $region8
    $region5: #{tpu_custom_call.1} parent=1 // loop_body
      %s23 = ssub.s32 %s18, 1
      %s24 = ssub.s32 %s18, 2
      %s31 = sadd.s32 1, %s26
      %p32 = scmp.ge.s32.totalorder %s31, 1
      %s33 = scalar_select %p32, 0, %s31
      %s34 = sadd.s32 1, %s25
      %s35 = scalar_select %p32, %s34, %s25
      %p36 = scmp.ge.s32.totalorder %s35, 2
      %s37 = scalar_select %p36, 0, %s35
      %s38 = ssub.s32 %s26, %s33
      %s39 = ssub.s32 %s25, %s37
      %s40 = sor.u32 %s38, %s39
      %p41 = scmp.eq.s32.totalorder %s40, 0
      %s43 = sadd.s32 %s42, 1
      %s44 = scalar_select %p41, %s42, %s43
      %p47 = pneg %p41
      %p48 = scmp.eq.s32.totalorder %s18, 1
      %p49 = por %p47, %p48
      %p50 = scmp.ne.s32.totalorder %s42, %s45
      %p51 = scmp.eq.s32.totalorder %s18, 0
      %p52 = por %p50, %p51
      %p53 = scmp.ne.s32.totalorder %s42, %s45
      %p54 = scmp.eq.s32.totalorder %s23, 1
      %p55 = por %p53, %p54
      %p56 = scmp.ne.s32.totalorder %s45, %s46
      %p57 = scmp.eq.s32.totalorder %s23, 0
      %p58 = por %p56, %p57
      %p59 = scmp.ne.s32.totalorder %s45, %s46
      %p60 = scmp.eq.s32.totalorder %s24, 1
      %p61 = por %p59, %p60
      %p63 = scmp.ne.s32.totalorder %s46, %s62
      %p64 = scmp.eq.s32.totalorder %s24, 0
      %p65 = por %p63, %p64
      %s67 = sadd.s32 %s66, 1
      %p70 = scmp.eq.s32.totalorder %s18, 1
      %p71 = scmp.ne.s32.totalorder %s66, %s68
      %p72 = scmp.eq.s32.totalorder %s18, 0
      %p73 = por %p71, %p72
      %p74 = scmp.ne.s32.totalorder %s66, %s68
      %p75 = scmp.eq.s32.totalorder %s23, 1
      %p76 = por %p74, %p75
      %p77 = scmp.ne.s32.totalorder %s68, %s69
      %p78 = scmp.eq.s32.totalorder %s23, 0
      %p79 = por %p77, %p78
      %p80 = scmp.ne.s32.totalorder %s68, %s69
      %p81 = scmp.eq.s32.totalorder %s24, 1
      %p82 = por %p80, %p81
      %p84 = scmp.ne.s32.totalorder %s69, %s83
      %p85 = scmp.eq.s32.totalorder %s24, 0
      %p86 = por %p84, %p85
      %s88 = sadd.s32 %s87, 1
      %p91 = scmp.eq.s32.totalorder %s18, 1
      %p92 = scmp.ne.s32.totalorder %s87, %s89
      %p93 = scmp.eq.s32.totalorder %s18, 0
      %p94 = por %p92, %p93
      %p95 = scmp.ne.s32.totalorder %s87, %s89
      %p96 = scmp.eq.s32.totalorder %s23, 1
      %p97 = por %p95, %p96
      %p98 = scmp.ne.s32.totalorder %s89, %s90
      %p99 = scmp.eq.s32.totalorder %s23, 0
      %p100 = por %p98, %p99
      %p101 = scmp.ne.s32.totalorder %s89, %s90
      %p102 = scmp.eq.s32.totalorder %s24, 1
      %p103 = por %p101, %p102
      %p105 = scmp.ne.s32.totalorder %s90, %s104
      %p106 = scmp.eq.s32.totalorder %s24, 0
      %p107 = por %p105, %p106
      %s109 = sadd.s32 %s108, 1
      %p112 = scmp.eq.s32.totalorder %s18, 1
      %p113 = scmp.ne.s32.totalorder %s108, %s110
      %p114 = scmp.eq.s32.totalorder %s18, 0
      %p115 = por %p113, %p114
      %p116 = scmp.ne.s32.totalorder %s108, %s110
      %p117 = scmp.eq.s32.totalorder %s23, 1
      %p118 = por %p116, %p117
      %p119 = scmp.ne.s32.totalorder %s110, %s111
      %p120 = scmp.eq.s32.totalorder %s23, 0
      %p121 = por %p119, %p120
      %p122 = scmp.ne.s32.totalorder %s110, %s111
      %p123 = scmp.eq.s32.totalorder %s24, 1
      %p124 = por %p122, %p123
      %p126 = scmp.ne.s32.totalorder %s111, %s125
      %p127 = scmp.eq.s32.totalorder %s24, 0
      %p128 = por %p126, %p127
      %s130 = sadd.s32 %s129, 1
      %p133 = scmp.eq.s32.totalorder %s18, 1
      %p134 = scmp.ne.s32.totalorder %s129, %s131
      %p135 = scmp.eq.s32.totalorder %s18, 0
      %p136 = por %p134, %p135
      %p137 = scmp.ne.s32.totalorder %s129, %s131
      %p138 = scmp.eq.s32.totalorder %s23, 1
      %p139 = por %p137, %p138
      %p140 = scmp.ne.s32.totalorder %s131, %s132
      %p141 = scmp.eq.s32.totalorder %s23, 0
      %p142 = por %p140, %p141
      %p143 = scmp.ne.s32.totalorder %s131, %s132
      %p144 = scmp.eq.s32.totalorder %s24, 1
      %p145 = por %p143, %p144
      %p147 = scmp.ne.s32.totalorder %s132, %s146
      %p148 = scmp.eq.s32.totalorder %s24, 0
      %p149 = por %p147, %p148
      %s151 = sadd.s32 %s150, 1
      %p154 = scmp.eq.s32.totalorder %s18, 1
      %p155 = scmp.ne.s32.totalorder %s150, %s152
      %p156 = scmp.eq.s32.totalorder %s18, 0
      %p157 = por %p155, %p156
      %p158 = scmp.ne.s32.totalorder %s150, %s152
      %p159 = scmp.eq.s32.totalorder %s23, 1
      %p160 = por %p158, %p159
      %p161 = scmp.ne.s32.totalorder %s152, %s153
      %p162 = scmp.eq.s32.totalorder %s23, 0
      %p163 = por %p161, %p162
      %p164 = scmp.ne.s32.totalorder %s152, %s153
      %p165 = scmp.eq.s32.totalorder %s24, 1
      %p166 = por %p164, %p165
      %p168 = scmp.ne.s32.totalorder %s153, %s167
      %p169 = scmp.eq.s32.totalorder %s24, 0
      %p170 = por %p168, %p169
      %s172 = sadd.s32 %s171, 1
      %p175 = scmp.eq.s32.totalorder %s18, 1
      %p176 = scmp.ne.s32.totalorder %s171, %s173
      %p177 = scmp.eq.s32.totalorder %s18, 0
      %p178 = por %p176, %p177
      %p179 = scmp.ne.s32.totalorder %s171, %s173
      %p180 = scmp.eq.s32.totalorder %s23, 1
      %p181 = por %p179, %p180
      %p182 = scmp.ne.s32.totalorder %s173, %s174
      %p183 = scmp.eq.s32.totalorder %s23, 0
      %p184 = por %p182, %p183
      %p185 = scmp.ne.s32.totalorder %s173, %s174
      %p186 = scmp.eq.s32.totalorder %s24, 1
      %p187 = por %p185, %p186
      %p189 = scmp.ne.s32.totalorder %s174, %s188
      %p190 = scmp.eq.s32.totalorder %s24, 0
      %p191 = por %p189, %p190
      %s192 = ssub.s32 %s25, %s37
      %p193 = scmp.eq.s32.totalorder %s192, 0
      %s195 = sadd.s32 %s194, 1
      %s196 = scalar_select %p193, %s194, %s195
      %p199 = pneg %p193
      %p200 = scmp.eq.s32.totalorder %s18, 1
      %p201 = por %p199, %p200
      %p202 = scmp.ne.s32.totalorder %s194, %s197
      %p203 = scmp.eq.s32.totalorder %s18, 0
      %p204 = por %p202, %p203
      %p205 = scmp.ne.s32.totalorder %s194, %s197
      %p206 = scmp.eq.s32.totalorder %s23, 1
      %p207 = por %p205, %p206
      %p208 = scmp.ne.s32.totalorder %s197, %s198
      %p209 = scmp.eq.s32.totalorder %s23, 0
      %p210 = por %p208, %p209
      %p211 = scmp.ne.s32.totalorder %s197, %s198
      %p212 = scmp.eq.s32.totalorder %s24, 1
      %p213 = por %p211, %p212
      %p215 = scmp.ne.s32.totalorder %s198, %s214
      %p216 = scmp.eq.s32.totalorder %s24, 0
      %p217 = por %p215, %p216
      %p218 = scmp.le.s32.totalorder 1, %s18
      %p219 = scmp.lt.s32.totalorder %s18, 3
      %p220 = pnand %p218, %p219
      %p221 = pneg %p220
      // Predicated region
      $region9: #{tpu_custom_call.1} parent=5 // pred_check
        _
      $region10: #{tpu_custom_call.1} parent=5 // pred_check_branch
        %223 = sbr.rel (%p220) target = $region12
      $region11: #{tpu_custom_call.1} parent=5 // pred_region
        %s224 = ssub.s32 %s18, 1
        // Predicated region
        $region13: #{tpu_custom_call.1} parent=11 // pred_check
          %p225 = pneg %p79
        $region14: #{tpu_custom_call.1} parent=11 // pred_check_branch
          %227 = sbr.rel (%p225) target = $region16
        $region15: #{tpu_custom_call.1} parent=11 // pred_region
          %s229 = ssub.s32 1024, 1024
          %230 = vsyncadd [#allocation6], %s229
          %s231 = sshll.u32 [#allocation5], 4
          %s232 = int_to_ptr.vmem [resolvable:$true] %s231
          %237 = dma.hbm_to_vmem [thread:$0]  %s1, 1024, %s232, [#allocation6], 64, 64, 4
        $region16: #{tpu_custom_call.1} parent=11 // pred_fallthru
          _
        // Predicated region
        $region17: #{tpu_custom_call.1} parent=11 // pred_check
          %p238 = pneg %p100
        $region18: #{tpu_custom_call.1} parent=11 // pred_check_branch
          %240 = sbr.rel (%p238) target = $region20
        $region19: #{tpu_custom_call.1} parent=11 // pred_region
          %s242 = ssub.s32 64, 64
          %243 = vsyncadd [#allocation6], %s242
          %s245 = sshll.u32 [#allocation7], 4
          %s246 = int_to_ptr.vmem [resolvable:$true] %s245
          %248 = dma.hbm_to_vmem [thread:$0]  %s2, 64, %s246, [#allocation6]
        $region20: #{tpu_custom_call.1} parent=11 // pred_fallthru
          _
        // Predicated region
        $region21: #{tpu_custom_call.1} parent=11 // pred_check
          %p249 = pneg %p121
        $region22: #{tpu_custom_call.1} parent=11 // pred_check_branch
          %251 = sbr.rel (%p249) target = $region24
        $region23: #{tpu_custom_call.1} parent=11 // pred_region
          _
        $region24: #{tpu_custom_call.1} parent=11 // pred_fallthru
          _
        // Predicated region
        $region25: #{tpu_custom_call.1} parent=11 // pred_check
          %p252 = pneg %p142
        $region26: #{tpu_custom_call.1} parent=11 // pred_check_branch
          %254 = sbr.rel (%p252) target = $region28
        $region27: #{tpu_custom_call.1} parent=11 // pred_region
          %s256 = ssub.s32 64, 64
          %257 = vsyncadd [#allocation9], %s256
          %s259 = sshll.u32 [#allocation8], 4
          %s260 = int_to_ptr.vmem [resolvable:$true] %s259
          %262 = dma.hbm_to_vmem [thread:$0]  %s4, 64, %s260, [#allocation9]
        $region28: #{tpu_custom_call.1} parent=11 // pred_fallthru
          _
        // Predicated region
        $region29: #{tpu_custom_call.1} parent=11 // pred_check
          %p263 = pneg %p163
        $region30: #{tpu_custom_call.1} parent=11 // pred_check_branch
          %265 = sbr.rel (%p263) target = $region32
        $region31: #{tpu_custom_call.1} parent=11 // pred_region
          _
        $region32: #{tpu_custom_call.1} parent=11 // pred_fallthru
          _
        // Predicated region
        $region33: #{tpu_custom_call.1} parent=11 // pred_check
          %p266 = pneg %p184
        $region34: #{tpu_custom_call.1} parent=11 // pred_check_branch
          %268 = sbr.rel (%p266) target = $region36
        $region35: #{tpu_custom_call.1} parent=11 // pred_region
          _
        $region36: #{tpu_custom_call.1} parent=11 // pred_fallthru
          _
      $region12: #{tpu_custom_call.1} parent=5 // pred_fallthru
        _
      %p269 = scmp.lt.s32.totalorder %s18, 2
      // Predicated region
      $region37: #{tpu_custom_call.1} parent=5 // pred_check
        %p270 = pneg %p269
      $region38: #{tpu_custom_call.1} parent=5 // pred_check_branch
        %272 = sbr.rel (%p270) target = $region40
      $region39: #{tpu_custom_call.1} parent=5 // pred_region
        // Predicated region
        $region41: #{tpu_custom_call.1} parent=39 // pred_check
          %p273 = pneg %p52
        $region42: #{tpu_custom_call.1} parent=39 // pred_check_branch
          %275 = sbr.rel (%p273) target = $region44
        $region43: #{tpu_custom_call.1} parent=39 // pred_region
          %s276 = sand.u32 %s42, 1
          %s277 = scalar_lea.sflag [#allocation4], %s276
          %s278 = sand.u32 %s42, 1
          %s279 = smul.addr %s278, 32
          %s280 = scalar_lea.vmem [#allocation3], %s279
          %s281 = smul.u32 8, %s26
          %s283 = ssub.s32 512, 512
          %284 = vsyncadd %s277, %s283
          %s285 = smul.addr %s281, 2
          %s286 = sadd.s32 %s25, %s285
          %s287 = smul.addr %s286, 64
          %s288 = scalar_lea.hbm %s0, %s287
          %s289 = sshll.u32 %s280, 4
          %s290 = int_to_ptr.vmem [resolvable:$true] %s289
          %295 = dma.hbm_to_vmem [thread:$0]  %s288, 512, %s290, %s277, 128, 64, 4
        $region44: #{tpu_custom_call.1} parent=39 // pred_fallthru
          _
      $region40: #{tpu_custom_call.1} parent=5 // pred_fallthru
        _
      %p296 = scmp.le.s32.totalorder 1, %s18
      %p297 = scmp.lt.s32.totalorder %s18, 3
      %p298 = pnand %p296, %p297
      %p299 = pneg %p298
      // Predicated region
      $region45: #{tpu_custom_call.1} parent=5 // pred_check
        _
      $region46: #{tpu_custom_call.1} parent=5 // pred_check_branch
        %301 = sbr.rel (%p298) target = $region48
      $region47: #{tpu_custom_call.1} parent=5 // pred_region
        %s302 = ssub.s32 %s18, 1
        %s303 = sand.u32 %s45, 1
        %s304 = scalar_lea.sflag [#allocation4], %s303
        %s305 = sand.u32 %s45, 1
        %s306 = smul.addr %s305, 32
        %s307 = scalar_lea.vmem [#allocation3], %s306
        // Predicated region
        $region49: #{tpu_custom_call.1} parent=47 // pred_check
          %p308 = pneg %p58
        $region50: #{tpu_custom_call.1} parent=47 // pred_check_branch
          %310 = sbr.rel (%p308) target = $region52
        $region51: #{tpu_custom_call.1} parent=47 // pred_region
          %311 = dma.done %s304, 512
        $region52: #{tpu_custom_call.1} parent=47 // pred_fallthru
          _
        // Predicated region
        $region53: #{tpu_custom_call.1} parent=47 // pred_check
          %p312 = pneg %p79
        $region54: #{tpu_custom_call.1} parent=47 // pred_check_branch
          %314 = sbr.rel (%p312) target = $region56
        $region55: #{tpu_custom_call.1} parent=47 // pred_region
          %315 = dma.done [#allocation6], 1024
        $region56: #{tpu_custom_call.1} parent=47 // pred_fallthru
          _
        // Predicated region
        $region57: #{tpu_custom_call.1} parent=47 // pred_check
          %p316 = pneg %p100
        $region58: #{tpu_custom_call.1} parent=47 // pred_check_branch
          %318 = sbr.rel (%p316) target = $region60
        $region59: #{tpu_custom_call.1} parent=47 // pred_region
          %319 = dma.done [#allocation6], 64
        $region60: #{tpu_custom_call.1} parent=47 // pred_fallthru
          _
        // Predicated region
        $region61: #{tpu_custom_call.1} parent=47 // pred_check
          %p320 = pneg %p142
        $region62: #{tpu_custom_call.1} parent=47 // pred_check_branch
          %322 = sbr.rel (%p320) target = $region64
        $region63: #{tpu_custom_call.1} parent=47 // pred_region
          %323 = dma.done [#allocation9], 64
        $region64: #{tpu_custom_call.1} parent=47 // pred_fallthru
          _
        %s324 = sand.u32 %s45, 1
        %s325 = scalar_lea.sflag [#allocation4], %s324
        %s326 = sand.u32 %s45, 1
        %s327 = smul.addr %s326, 32
        %s328 = scalar_lea.vmem [#allocation3], %s327
        %p329 = pneg %p58
        %p330 = pneg %p55
        %p331 = pneg %p79
        %p332 = pneg %p76
        %p333 = pneg %p100
        %p334 = pneg %p97
        %p335 = pneg %p121
        %p336 = pneg %p118
        %p337 = pneg %p142
        %p338 = pneg %p139
        %p339 = pneg %p163
        %p340 = pneg %p160
        %p341 = pneg %p184
        %p342 = pneg %p181
        %p343 = pneg %p210
        %p344 = pneg %p207
        %p345 = scmp.lt.s32.totalorder %s27, 1
        %s346 = scalar_select %p345, %s27, 1
        %s347 = smul.addr %s346, 8
        %s348 = scalar_lea.vmem %s7, %s347
        %s349 = smul.u32 8, %s28
        %p350 = scmp.lt.s32.totalorder %s27, 1
        %s351 = scalar_select %p350, %s27, 1
        %s352 = smul.addr %s351, 8
        %s353 = scalar_lea.vmem %s7, %s352
        %p355 = scmp.eq.s32.totalorder %s28, 0
        // Predicated region
        $region65: #{tpu_custom_call.1} parent=47 // pred_check
          %p356 = pneg %p355
        $region66: #{tpu_custom_call.1} parent=47 // pred_check_branch
          %358 = sbr.rel (%p356) target = $region68
        $region67: #{tpu_custom_call.1} parent=47 // pred_region
          %359 = vst [vmem:[#allocation2] sm:$0x3] 0
          %360 = vst [vmem:[#allocation2 + $0x2] sm:$0x3] 0
          %361 = vst [vmem:[#allocation2 + $0x4] sm:$0x3] 0
          %362 = vst [vmem:[#allocation2 + $0x6] sm:$0x3] 0
          %363 = vst [vmem:[#allocation2 + $0x8] sm:$0x3] 0
          %364 = vst [vmem:[#allocation2 + $0xa] sm:$0x3] 0
          %365 = vst [vmem:[#allocation2 + $0xc] sm:$0x3] 0
          %366 = vst [vmem:[#allocation2 + $0xe] sm:$0x3] 0
        $region68: #{tpu_custom_call.1} parent=47 // pred_fallthru
          _
        %v367 = vld [vmem:[#allocation5] sm:$0xf]
        %v368 = vld [vmem:[#allocation5 + $0x4] sm:$0xf]
        %v369 = vld [vmem:[#allocation5 + $0x8] sm:$0xf]
        %v370 = vld [vmem:[#allocation5 + $0xc] sm:$0xf]
        %v371 = vld [vmem:[#allocation5 + $0x10] sm:$0xf]
        %v372 = vld [vmem:[#allocation5 + $0x14] sm:$0xf]
        %v373 = vld [vmem:[#allocation5 + $0x18] sm:$0xf]
        %v374 = vld [vmem:[#allocation5 + $0x1c] sm:$0xf]
        %v375 = vld [vmem:[#allocation5 + $0x20] sm:$0xf]
        %v376 = vld [vmem:[#allocation5 + $0x24] sm:$0xf]
        %v377 = vld [vmem:[#allocation5 + $0x28] sm:$0xf]
        %v378 = vld [vmem:[#allocation5 + $0x2c] sm:$0xf]
        %v379 = vld [vmem:[#allocation5 + $0x30] sm:$0xf]
        %v380 = vld [vmem:[#allocation5 + $0x34] sm:$0xf]
        %v381 = vld [vmem:[#allocation5 + $0x38] sm:$0xf]
        %v382 = vld [vmem:[#allocation5 + $0x3c] sm:$0xf]
        %v383 = vld [vmem:[#allocation7] sm:$0xf]
        %v384 = vld [vmem:[#allocation8] sm:$0xf]
        %v385 = vld [vmem:[%s3] sm:$0xf]
        %v386 = vld [vmem:[#allocation2] sm:$0x3]
        %v387 = vld [vmem:[#allocation2 + $0x2] sm:$0x3]
        %v388 = vld [vmem:[#allocation2 + $0x4] sm:$0x3]
        %v389 = vld [vmem:[#allocation2 + $0x6] sm:$0x3]
        %v390 = vld [vmem:[#allocation2 + $0x8] sm:$0x3]
        %v391 = vld [vmem:[#allocation2 + $0xa] sm:$0x3]
        %v392 = vld [vmem:[#allocation2 + $0xc] sm:$0x3]
        %v393 = vld [vmem:[#allocation2 + $0xe] sm:$0x3]
        %v394 = vld [vmem:[%s307] sm:$0xf]
        %v395 = vunpack.c.l.bf16 %v394
        %v404 = vcombine.low %v386, %v387
        %v405 = vcombine.low %v388, %v389
        %v407 = vunpack.c.l.s4 1983009808
        %v408 = vunpack.c.0.s8 %v407
        %v409 = vlaneseq
        %v410 = vshrl.u32 %v409, 7
        %v411 = vsub.s32 %v408, %v410
        %v412 = vrot.slane %v404, %v411
        %v414 = vunpack.c.l.s4 1983009808
        %v415 = vunpack.c.0.s8 %v414
        %v416 = vlaneseq
        %v417 = vshrl.u32 %v416, 7
        %v418 = vsub.s32 %v415, %v417
        %v419 = vrot.slane %v405, %v418
        %v420 = vcombine.low %v412, %v419
        %v421 = vcombine.low %v390, %v391
        %v422 = vcombine.low %v392, %v393
        %v424 = vunpack.c.l.s4 1983009808
        %v425 = vunpack.c.0.s8 %v424
        %v426 = vlaneseq
        %v427 = vshrl.u32 %v426, 7
        %v428 = vsub.s32 %v425, %v427
        %v429 = vrot.slane %v421, %v428
        %v431 = vunpack.c.l.s4 1983009808
        %v432 = vunpack.c.0.s8 %v431
        %v433 = vlaneseq
        %v434 = vshrl.u32 %v433, 7
        %v435 = vsub.s32 %v432, %v434
        %v436 = vrot.slane %v422, %v435
        %v437 = vcombine.low %v429, %v436
        %v456 = vunpack.c.l.b16 %v367
        %v457 = vunpack.c.l.b16 %v368
        %v458 = vunpack.c.l.b16 %v369
        %v459 = vunpack.c.l.b16 %v370
        %v460 = vunpack.c.l.b16 %v371
        %v461 = vunpack.c.l.b16 %v372
        %v462 = vunpack.c.l.b16 %v373
        %v463 = vunpack.c.l.b16 %v374
        %v464 = vunpack.c.l.b16 %v375
        %v465 = vunpack.c.l.b16 %v376
        %v466 = vunpack.c.l.b16 %v377
        %v467 = vunpack.c.l.b16 %v378
        %v468 = vunpack.c.l.b16 %v379
        %v469 = vunpack.c.l.b16 %v380
        %v470 = vunpack.c.l.b16 %v381
        %v471 = vunpack.c.l.b16 %v382
        %v472 = vpack.c.b16 %v457, %v456
        %v473 = vpack.c.b16 %v459, %v458
        %v474 = vpack.c.b16 %v461, %v460
        %v475 = vpack.c.b16 %v463, %v462
        %v476 = vpack.c.b16 %v465, %v464
        %v477 = vpack.c.b16 %v467, %v466
        %v478 = vpack.c.b16 %v469, %v468
        %v479 = vpack.c.b16 %v471, %v470
        %488 = vmatprep.subr.bf16.mxu0 0
        %489 = vmatpush1.bf16.msra.mxu0 %v479
        %490 = vmatprep.subr.bf16.mxu0 0
        %491 = vmatpush1.bf16.msra.mxu0 %v478
        %492 = vmatprep.subr.bf16.mxu0 0
        %493 = vmatpush1.bf16.msra.mxu0 %v477
        %494 = vmatprep.subr.bf16.mxu0 0
        %495 = vmatpush1.bf16.msra.mxu0 %v476
        %496 = vmatprep.subr.bf16.mxu0 0
        %497 = vmatpush1.bf16.msra.mxu0 %v475
        %498 = vmatprep.subr.bf16.mxu0 0
        %499 = vmatpush1.bf16.msra.mxu0 %v474
        %500 = vmatprep.subr.bf16.mxu0 0
        %501 = vmatpush1.bf16.msra.mxu0 %v473
        %502 = vmatprep.subr.bf16.mxu0 0
        %503 = vmatpush1.bf16.msra.mxu0 %v472
        %504 = vmatprep.subr.bf16.mxu0 0
        %505 = vmatpush2.bf16.msra.mxu0 0
        %506 = vmatprep.subr.bf16.mxu0 0
        %507 = vmatpush2.bf16.msra.mxu0 0
        %508 = vmatprep.subr.bf16.mxu0 0
        %509 = vmatpush2.bf16.msra.mxu0 0
        %510 = vmatprep.subr.bf16.mxu0 0
        %511 = vmatpush2.bf16.msra.mxu0 0
        %512 = vmatprep.subr.bf16.mxu0 0
        %513 = vmatpush2.bf16.msra.mxu0 0
        %514 = vmatprep.subr.bf16.mxu0 0
        %515 = vmatpush2.bf16.msra.mxu0 0
        %516 = vmatprep.subr.bf16.mxu0 0
        %517 = vmatpush2.bf16.msra.mxu0 0
        %518 = vmatprep.subr.bf16.mxu0 0
        %519 = vmatpush2.bf16.msra.mxu0 0
        %520 = vmatprep.mubr.bf16.mxu0 0
        %521 = vmatmul.mubr.bf16.gmra.mxu0 %v420
        %v522 = vpop.f32.mrf.mxu0
        %v523 = vadd.f32 0.0, %v522
        %v524 = vpop.f32.mrf.mxu0
        %v525 = vpop.f32.mrf.mxu0
        %v526 = vadd.f32 0.0, %v525
        %v527 = vpop.f32.mrf.mxu0
        %528 = vmatprep.mubr.bf16.mxu0 0
        %529 = vmatmul.mubr.bf16.gmra.mxu0 %v437
        %v530 = vpop.f32.mrf.mxu0
        %v531 = vadd.f32 0.0, %v530
        %v532 = vpop.f32.mrf.mxu0
        %v533 = vpop.f32.mrf.mxu0
        %v534 = vadd.f32 0.0, %v533
        %v535 = vpop.f32.mrf.mxu0
        %536 = vdwg.mxu0
        %v541 = vcombine.high %v523, %v523
        %v542 = vcombine.high %v526, %v526
        %v543 = vcombine.high %v531, %v531
        %v544 = vcombine.high %v534, %v534
        %v549 = vmul.f32 %v383, %v523
        %v550 = vmul.f32 %v383, %v541
        %v551 = vmul.f32 %v383, %v526
        %v552 = vmul.f32 %v383, %v542
        %v553 = vmul.f32 %v383, %v531
        %v554 = vmul.f32 %v383, %v543
        %v555 = vmul.f32 %v383, %v534
        %v556 = vmul.f32 %v383, %v544
        %v557 = vadd.f32 %v549, %v384
        %v558 = vadd.f32 %v550, %v384
        %v559 = vadd.f32 %v551, %v384
        %v560 = vadd.f32 %v552, %v384
        %v561 = vadd.f32 %v553, %v384
        %v562 = vadd.f32 %v554, %v384
        %v563 = vadd.f32 %v555, %v384
        %v564 = vadd.f32 %v556, %v384
        %v566 = vcombine.high %v395, %v395
        %v568 = vunpack.c.l.s4 1966171168
        %v569 = vunpack.c.0.s8 %v568
        %v570 = vlaneseq
        %v571 = vshrl.u32 %v570, 7
        %v572 = vsub.s32 %v569, %v571
        %v573 = vrot.slane %v395, %v572
        %v575 = vunpack.c.l.s4 1966171168
        %v576 = vunpack.c.0.s8 %v575
        %v577 = vlaneseq
        %v578 = vshrl.u32 %v577, 7
        %v579 = vsub.s32 %v576, %v578
        %v580 = vrot.slane %v566, %v579
        %v581 = vcombine.high %v573, %v573
        %v582 = vcombine.high %v580, %v580
        %v584 = vunpack.c.l.s4 1966171168
        %v585 = vunpack.c.0.s8 %v584
        %v586 = vlaneseq
        %v587 = vshrl.u32 %v586, 7
        %v588 = vsub.s32 %v585, %v587
        %v589 = vrot.slane %v573, %v588
        %v591 = vunpack.c.l.s4 1966171168
        %v592 = vunpack.c.0.s8 %v591
        %v593 = vlaneseq
        %v594 = vshrl.u32 %v593, 7
        %v595 = vsub.s32 %v592, %v594
        %v596 = vrot.slane %v580, %v595
        %v598 = vunpack.c.l.s4 1966171168
        %v599 = vunpack.c.0.s8 %v598
        %v600 = vlaneseq
        %v601 = vshrl.u32 %v600, 7
        %v602 = vsub.s32 %v599, %v601
        %v603 = vrot.slane %v581, %v602
        %v605 = vunpack.c.l.s4 1966171168
        %v606 = vunpack.c.0.s8 %v605
        %v607 = vlaneseq
        %v608 = vshrl.u32 %v607, 7
        %v609 = vsub.s32 %v606, %v608
        %v610 = vrot.slane %v582, %v609
        %v611 = vcombine.high %v589, %v589
        %v612 = vcombine.high %v596, %v596
        %v613 = vcombine.high %v603, %v603
        %v614 = vcombine.high %v610, %v610
        %v615 = vlaneseq
        %v616 = vshrl.u32 %v615, 7
        %v617 = vsub.s32 0, %v616
        %v618 = vrot.slane %v589, %v617
        %v619 = vlaneseq
        %v620 = vshrl.u32 %v619, 7
        %v621 = vsub.s32 0, %v620
        %v622 = vrot.slane %v603, %v621
        %v623 = vlaneseq
        %v624 = vshrl.u32 %v623, 7
        %v625 = vsub.s32 0, %v624
        %v626 = vrot.slane %v611, %v625
        %v627 = vlaneseq
        %v628 = vshrl.u32 %v627, 7
        %v629 = vsub.s32 0, %v628
        %v630 = vrot.slane %v613, %v629
        %v631 = vlaneseq
        %v632 = vshrl.u32 %v631, 7
        %v633 = vsub.s32 0, %v632
        %v634 = vrot.slane %v596, %v633
        %v635 = vlaneseq
        %v636 = vshrl.u32 %v635, 7
        %v637 = vsub.s32 0, %v636
        %v638 = vrot.slane %v610, %v637
        %v639 = vlaneseq
        %v640 = vshrl.u32 %v639, 7
        %v641 = vsub.s32 0, %v640
        %v642 = vrot.slane %v612, %v641
        %v643 = vlaneseq
        %v644 = vshrl.u32 %v643, 7
        %v645 = vsub.s32 0, %v644
        %v646 = vrot.slane %v614, %v645
        %v655 = vmul.f32 %v385, %v618
        %v656 = vmul.f32 %v385, %v622
        %v657 = vmul.f32 %v385, %v626
        %v658 = vmul.f32 %v385, %v630
        %v659 = vmul.f32 %v385, %v634
        %v660 = vmul.f32 %v385, %v638
        %v661 = vmul.f32 %v385, %v642
        %v662 = vmul.f32 %v385, %v646
        %v663 = vadd.f32 %v557, %v655
        %v664 = vadd.f32 %v558, %v656
        %v665 = vadd.f32 %v559, %v657
        %v666 = vadd.f32 %v560, %v658
        %v667 = vadd.f32 %v561, %v659
        %v668 = vadd.f32 %v562, %v660
        %v669 = vadd.f32 %v563, %v661
        %v670 = vadd.f32 %v564, %v662
        %v671 = vtanh.pop %v663
        %v672 = vtanh.pop %v664
        %v673 = vtanh.pop %v665
        %v674 = vtanh.pop %v666
        %v675 = vtanh.pop %v667
        %v676 = vtanh.pop %v668
        %v677 = vtanh.pop %v669
        %v678 = vtanh.pop %v670
        %v679 = vpack.c.bf16 %v671, %v671
        %v680 = vpack.c.bf16 %v672, %v672
        %v681 = vpack.c.bf16 %v673, %v673
        %v682 = vpack.c.bf16 %v674, %v674
        %v683 = vpack.c.bf16 %v675, %v675
        %v684 = vpack.c.bf16 %v676, %v676
        %v685 = vpack.c.bf16 %v677, %v677
        %v686 = vpack.c.bf16 %v678, %v678
        %s687 = scalar_lea.vmem %s307, 4 [#allocation3]
        %v688 = vld [vmem:[%s687] sm:$0xf]
        %v689 = vunpack.c.l.bf16 %v688
        %v698 = vcombine.low %v679, %v680
        %v699 = vcombine.low %v681, %v682
        %v701 = vunpack.c.l.s4 1983009808
        %v702 = vunpack.c.0.s8 %v701
        %v703 = vlaneseq
        %v704 = vshrl.u32 %v703, 7
        %v705 = vsub.s32 %v702, %v704
        %v706 = vrot.slane %v698, %v705
        %v708 = vunpack.c.l.s4 1983009808
        %v709 = vunpack.c.0.s8 %v708
        %v710 = vlaneseq
        %v711 = vshrl.u32 %v710, 7
        %v712 = vsub.s32 %v709, %v711
        %v713 = vrot.slane %v699, %v712
        %v714 = vcombine.low %v706, %v713
        %v715 = vcombine.low %v683, %v684
        %v716 = vcombine.low %v685, %v686
        %v718 = vunpack.c.l.s4 1983009808
        %v719 = vunpack.c.0.s8 %v718
        %v720 = vlaneseq
        %v721 = vshrl.u32 %v720, 7
        %v722 = vsub.s32 %v719, %v721
        %v723 = vrot.slane %v715, %v722
        %v725 = vunpack.c.l.s4 1983009808
        %v726 = vunpack.c.0.s8 %v725
        %v727 = vlaneseq
        %v728 = vshrl.u32 %v727, 7
        %v729 = vsub.s32 %v726, %v728
        %v730 = vrot.slane %v716, %v729
        %v731 = vcombine.low %v723, %v730
        %734 = vmatprep.subr.bf16.mxu0 0
        %735 = vmatpush1.bf16.msra.mxu0 %v479
        %736 = vmatprep.subr.bf16.mxu0 0
        %737 = vmatpush1.bf16.msra.mxu0 %v478
        %738 = vmatprep.subr.bf16.mxu0 0
        %739 = vmatpush1.bf16.msra.mxu0 %v477
        %740 = vmatprep.subr.bf16.mxu0 0
        %741 = vmatpush1.bf16.msra.mxu0 %v476
        %742 = vmatprep.subr.bf16.mxu0 0
        %743 = vmatpush1.bf16.msra.mxu0 %v475
        %744 = vmatprep.subr.bf16.mxu0 0
        %745 = vmatpush1.bf16.msra.mxu0 %v474
        %746 = vmatprep.subr.bf16.mxu0 0
        %747 = vmatpush1.bf16.msra.mxu0 %v473
        %748 = vmatprep.subr.bf16.mxu0 0
        %749 = vmatpush1.bf16.msra.mxu0 %v472
        %750 = vmatprep.subr.bf16.mxu0 0
        %751 = vmatpush2.bf16.msra.mxu0 0
        %752 = vmatprep.subr.bf16.mxu0 0
        %753 = vmatpush2.bf16.msra.mxu0 0
        %754 = vmatprep.subr.bf16.mxu0 0
        %755 = vmatpush2.bf16.msra.mxu0 0
        %756 = vmatprep.subr.bf16.mxu0 0
        %757 = vmatpush2.bf16.msra.mxu0 0
        %758 = vmatprep.subr.bf16.mxu0 0
        %759 = vmatpush2.bf16.msra.mxu0 0
        %760 = vmatprep.subr.bf16.mxu0 0
        %761 = vmatpush2.bf16.msra.mxu0 0
        %762 = vmatprep.subr.bf16.mxu0 0
        %763 = vmatpush2.bf16.msra.mxu0 0
        %764 = vmatprep.subr.bf16.mxu0 0
        %765 = vmatpush2.bf16.msra.mxu0 0
        %766 = vmatprep.mubr.bf16.mxu0 0
        %767 = vmatmul.mubr.bf16.gmra.mxu0 %v714
        %v768 = vpop.f32.mrf.mxu0
        %v769 = vadd.f32 0.0, %v768
        %v770 = vpop.f32.mrf.mxu0
        %v771 = vpop.f32.mrf.mxu0
        %v772 = vadd.f32 0.0, %v771
        %v773 = vpop.f32.mrf.mxu0
        %774 = vmatprep.mubr.bf16.mxu0 0
        %775 = vmatmul.mubr.bf16.gmra.mxu0 %v731
        %v776 = vpop.f32.mrf.mxu0
        %v777 = vadd.f32 0.0, %v776
        %v778 = vpop.f32.mrf.mxu0
        %v779 = vpop.f32.mrf.mxu0
        %v780 = vadd.f32 0.0, %v779
        %v781 = vpop.f32.mrf.mxu0
        %782 = vdwg.mxu0
        %v787 = vcombine.high %v769, %v769
        %v788 = vcombine.high %v772, %v772
        %v789 = vcombine.high %v777, %v777
        %v790 = vcombine.high %v780, %v780
        %v795 = vmul.f32 %v383, %v769
        %v796 = vmul.f32 %v383, %v787
        %v797 = vmul.f32 %v383, %v772
        %v798 = vmul.f32 %v383, %v788
        %v799 = vmul.f32 %v383, %v777
        %v800 = vmul.f32 %v383, %v789
        %v801 = vmul.f32 %v383, %v780
        %v802 = vmul.f32 %v383, %v790
        %v803 = vadd.f32 %v795, %v384
        %v804 = vadd.f32 %v796, %v384
        %v805 = vadd.f32 %v797, %v384
        %v806 = vadd.f32 %v798, %v384
        %v807 = vadd.f32 %v799, %v384
        %v808 = vadd.f32 %v800, %v384
        %v809 = vadd.f32 %v801, %v384
        %v810 = vadd.f32 %v802, %v384
        %v812 = vcombine.high %v689, %v689
        %v814 = vunpack.c.l.s4 1966171168
        %v815 = vunpack.c.0.s8 %v814
        %v816 = vlaneseq
        %v817 = vshrl.u32 %v816, 7
        %v818 = vsub.s32 %v815, %v817
        %v819 = vrot.slane %v689, %v818
        %v821 = vunpack.c.l.s4 1966171168
        %v822 = vunpack.c.0.s8 %v821
        %v823 = vlaneseq
        %v824 = vshrl.u32 %v823, 7
        %v825 = vsub.s32 %v822, %v824
        %v826 = vrot.slane %v812, %v825
        %v827 = vcombine.high %v819, %v819
        %v828 = vcombine.high %v826, %v826
        %v830 = vunpack.c.l.s4 1966171168
        %v831 = vunpack.c.0.s8 %v830
        %v832 = vlaneseq
        %v833 = vshrl.u32 %v832, 7
        %v834 = vsub.s32 %v831, %v833
        %v835 = vrot.slane %v819, %v834
        %v837 = vunpack.c.l.s4 1966171168
        %v838 = vunpack.c.0.s8 %v837
        %v839 = vlaneseq
        %v840 = vshrl.u32 %v839, 7
        %v841 = vsub.s32 %v838, %v840
        %v842 = vrot.slane %v826, %v841
        %v844 = vunpack.c.l.s4 1966171168
        %v845 = vunpack.c.0.s8 %v844
        %v846 = vlaneseq
        %v847 = vshrl.u32 %v846, 7
        %v848 = vsub.s32 %v845, %v847
        %v849 = vrot.slane %v827, %v848
        %v851 = vunpack.c.l.s4 1966171168
        %v852 = vunpack.c.0.s8 %v851
        %v853 = vlaneseq
        %v854 = vshrl.u32 %v853, 7
        %v855 = vsub.s32 %v852, %v854
        %v856 = vrot.slane %v828, %v855
        %v857 = vcombine.high %v835, %v835
        %v858 = vcombine.high %v842, %v842
        %v859 = vcombine.high %v849, %v849
        %v860 = vcombine.high %v856, %v856
        %v861 = vlaneseq
        %v862 = vshrl.u32 %v861, 7
        %v863 = vsub.s32 0, %v862
        %v864 = vrot.slane %v835, %v863
        %v865 = vlaneseq
        %v866 = vshrl.u32 %v865, 7
        %v867 = vsub.s32 0, %v866
        %v868 = vrot.slane %v849, %v867
        %v869 = vlaneseq
        %v870 = vshrl.u32 %v869, 7
        %v871 = vsub.s32 0, %v870
        %v872 = vrot.slane %v857, %v871
        %v873 = vlaneseq
        %v874 = vshrl.u32 %v873, 7
        %v875 = vsub.s32 0, %v874
        %v876 = vrot.slane %v859, %v875
        %v877 = vlaneseq
        %v878 = vshrl.u32 %v877, 7
        %v879 = vsub.s32 0, %v878
        %v880 = vrot.slane %v842, %v879
        %v881 = vlaneseq
        %v882 = vshrl.u32 %v881, 7
        %v883 = vsub.s32 0, %v882
        %v884 = vrot.slane %v856, %v883
        %v885 = vlaneseq
        %v886 = vshrl.u32 %v885, 7
        %v887 = vsub.s32 0, %v886
        %v888 = vrot.slane %v858, %v887
        %v889 = vlaneseq
        %v890 = vshrl.u32 %v889, 7
        %v891 = vsub.s32 0, %v890
        %v892 = vrot.slane %v860, %v891
        %v901 = vmul.f32 %v385, %v864
        %v902 = vmul.f32 %v385, %v868
        %v903 = vmul.f32 %v385, %v872
        %v904 = vmul.f32 %v385, %v876
        %v905 = vmul.f32 %v385, %v880
        %v906 = vmul.f32 %v385, %v884
        %v907 = vmul.f32 %v385, %v888
        %v908 = vmul.f32 %v385, %v892
        %v909 = vadd.f32 %v803, %v901
        %v910 = vadd.f32 %v804, %v902
        %v911 = vadd.f32 %v805, %v903
        %v912 = vadd.f32 %v806, %v904
        %v913 = vadd.f32 %v807, %v905
        %v914 = vadd.f32 %v808, %v906
        %v915 = vadd.f32 %v809, %v907
        %v916 = vadd.f32 %v810, %v908
        %v917 = vtanh.pop %v909
        %v918 = vtanh.pop %v910
        %v919 = vtanh.pop %v911
        %v920 = vtanh.pop %v912
        %v921 = vtanh.pop %v913
        %v922 = vtanh.pop %v914
        %v923 = vtanh.pop %v915
        %v924 = vtanh.pop %v916
        %v925 = vpack.c.bf16 %v917, %v917
        %v926 = vpack.c.bf16 %v918, %v918
        %v927 = vpack.c.bf16 %v919, %v919
        %v928 = vpack.c.bf16 %v920, %v920
        %v929 = vpack.c.bf16 %v921, %v921
        %v930 = vpack.c.bf16 %v922, %v922
        %v931 = vpack.c.bf16 %v923, %v923
        %v932 = vpack.c.bf16 %v924, %v924
        %s933 = scalar_lea.vmem %s307, 8 [#allocation3]
        %v934 = vld [vmem:[%s933] sm:$0xf]
        %v935 = vunpack.c.l.bf16 %v934
        %v944 = vcombine.low %v925, %v926
        %v945 = vcombine.low %v927, %v928
        %v947 = vunpack.c.l.s4 1983009808
        %v948 = vunpack.c.0.s8 %v947
        %v949 = vlaneseq
        %v950 = vshrl.u32 %v949, 7
        %v951 = vsub.s32 %v948, %v950
        %v952 = vrot.slane %v944, %v951
        %v954 = vunpack.c.l.s4 1983009808
        %v955 = vunpack.c.0.s8 %v954
        %v956 = vlaneseq
        %v957 = vshrl.u32 %v956, 7
        %v958 = vsub.s32 %v955, %v957
        %v959 = vrot.slane %v945, %v958
        %v960 = vcombine.low %v952, %v959
        %v961 = vcombine.low %v929, %v930
        %v962 = vcombine.low %v931, %v932
        %v964 = vunpack.c.l.s4 1983009808
        %v965 = vunpack.c.0.s8 %v964
        %v966 = vlaneseq
        %v967 = vshrl.u32 %v966, 7
        %v968 = vsub.s32 %v965, %v967
        %v969 = vrot.slane %v961, %v968
        %v971 = vunpack.c.l.s4 1983009808
        %v972 = vunpack.c.0.s8 %v971
        %v973 = vlaneseq
        %v974 = vshrl.u32 %v973, 7
        %v975 = vsub.s32 %v972, %v974
        %v976 = vrot.slane %v962, %v975
        %v977 = vcombine.low %v969, %v976
        %980 = vmatprep.subr.bf16.mxu0 0
        %981 = vmatpush1.bf16.msra.mxu0 %v479
        %982 = vmatprep.subr.bf16.mxu0 0
        %983 = vmatpush1.bf16.msra.mxu0 %v478
        %984 = vmatprep.subr.bf16.mxu0 0
        %985 = vmatpush1.bf16.msra.mxu0 %v477
        %986 = vmatprep.subr.bf16.mxu0 0
        %987 = vmatpush1.bf16.msra.mxu0 %v476
        %988 = vmatprep.subr.bf16.mxu0 0
        %989 = vmatpush1.bf16.msra.mxu0 %v475
        %990 = vmatprep.subr.bf16.mxu0 0
        %991 = vmatpush1.bf16.msra.mxu0 %v474
        %992 = vmatprep.subr.bf16.mxu0 0
        %993 = vmatpush1.bf16.msra.mxu0 %v473
        %994 = vmatprep.subr.bf16.mxu0 0
        %995 = vmatpush1.bf16.msra.mxu0 %v472
        %996 = vmatprep.subr.bf16.mxu0 0
        %997 = vmatpush2.bf16.msra.mxu0 0
        %998 = vmatprep.subr.bf16.mxu0 0
        %999 = vmatpush2.bf16.msra.mxu0 0
        %1000 = vmatprep.subr.bf16.mxu0 0
        %1001 = vmatpush2.bf16.msra.mxu0 0
        %1002 = vmatprep.subr.bf16.mxu0 0
        %1003 = vmatpush2.bf16.msra.mxu0 0
        %1004 = vmatprep.subr.bf16.mxu0 0
        %1005 = vmatpush2.bf16.msra.mxu0 0
        %1006 = vmatprep.subr.bf16.mxu0 0
        %1007 = vmatpush2.bf16.msra.mxu0 0
        %1008 = vmatprep.subr.bf16.mxu0 0
        %1009 = vmatpush2.bf16.msra.mxu0 0
        %1010 = vmatprep.subr.bf16.mxu0 0
        %1011 = vmatpush2.bf16.msra.mxu0 0
        %1012 = vmatprep.mubr.bf16.mxu0 0
        %1013 = vmatmul.mubr.bf16.gmra.mxu0 %v960
        %v1014 = vpop.f32.mrf.mxu0
        %v1015 = vadd.f32 0.0, %v1014
        %v1016 = vpop.f32.mrf.mxu0
        %v1017 = vpop.f32.mrf.mxu0
        %v1018 = vadd.f32 0.0, %v1017
        %v1019 = vpop.f32.mrf.mxu0
        %1020 = vmatprep.mubr.bf16.mxu0 0
        %1021 = vmatmul.mubr.bf16.gmra.mxu0 %v977
        %v1022 = vpop.f32.mrf.mxu0
        %v1023 = vadd.f32 0.0, %v1022
        %v1024 = vpop.f32.mrf.mxu0
        %v1025 = vpop.f32.mrf.mxu0
        %v1026 = vadd.f32 0.0, %v1025
        %v1027 = vpop.f32.mrf.mxu0
        %1028 = vdwg.mxu0
        %v1033 = vcombine.high %v1015, %v1015
        %v1034 = vcombine.high %v1018, %v1018
        %v1035 = vcombine.high %v1023, %v1023
        %v1036 = vcombine.high %v1026, %v1026
        %v1041 = vmul.f32 %v383, %v1015
        %v1042 = vmul.f32 %v383, %v1033
        %v1043 = vmul.f32 %v383, %v1018
        %v1044 = vmul.f32 %v383, %v1034
        %v1045 = vmul.f32 %v383, %v1023
        %v1046 = vmul.f32 %v383, %v1035
        %v1047 = vmul.f32 %v383, %v1026
        %v1048 = vmul.f32 %v383, %v1036
        %v1049 = vadd.f32 %v1041, %v384
        %v1050 = vadd.f32 %v1042, %v384
        %v1051 = vadd.f32 %v1043, %v384
        %v1052 = vadd.f32 %v1044, %v384
        %v1053 = vadd.f32 %v1045, %v384
        %v1054 = vadd.f32 %v1046, %v384
        %v1055 = vadd.f32 %v1047, %v384
        %v1056 = vadd.f32 %v1048, %v384
        %v1058 = vcombine.high %v935, %v935
        %v1060 = vunpack.c.l.s4 1966171168
        %v1061 = vunpack.c.0.s8 %v1060
        %v1062 = vlaneseq
        %v1063 = vshrl.u32 %v1062, 7
        %v1064 = vsub.s32 %v1061, %v1063
        %v1065 = vrot.slane %v935, %v1064
        %v1067 = vunpack.c.l.s4 1966171168
        %v1068 = vunpack.c.0.s8 %v1067
        %v1069 = vlaneseq
        %v1070 = vshrl.u32 %v1069, 7
        %v1071 = vsub.s32 %v1068, %v1070
        %v1072 = vrot.slane %v1058, %v1071
        %v1073 = vcombine.high %v1065, %v1065
        %v1074 = vcombine.high %v1072, %v1072
        %v1076 = vunpack.c.l.s4 1966171168
        %v1077 = vunpack.c.0.s8 %v1076
        %v1078 = vlaneseq
        %v1079 = vshrl.u32 %v1078, 7
        %v1080 = vsub.s32 %v1077, %v1079
        %v1081 = vrot.slane %v1065, %v1080
        %v1083 = vunpack.c.l.s4 1966171168
        %v1084 = vunpack.c.0.s8 %v1083
        %v1085 = vlaneseq
        %v1086 = vshrl.u32 %v1085, 7
        %v1087 = vsub.s32 %v1084, %v1086
        %v1088 = vrot.slane %v1072, %v1087
        %v1090 = vunpack.c.l.s4 1966171168
        %v1091 = vunpack.c.0.s8 %v1090
        %v1092 = vlaneseq
        %v1093 = vshrl.u32 %v1092, 7
        %v1094 = vsub.s32 %v1091, %v1093
        %v1095 = vrot.slane %v1073, %v1094
        %v1097 = vunpack.c.l.s4 1966171168
        %v1098 = vunpack.c.0.s8 %v1097
        %v1099 = vlaneseq
        %v1100 = vshrl.u32 %v1099, 7
        %v1101 = vsub.s32 %v1098, %v1100
        %v1102 = vrot.slane %v1074, %v1101
        %v1103 = vcombine.high %v1081, %v1081
        %v1104 = vcombine.high %v1088, %v1088
        %v1105 = vcombine.high %v1095, %v1095
        %v1106 = vcombine.high %v1102, %v1102
        %v1107 = vlaneseq
        %v1108 = vshrl.u32 %v1107, 7
        %v1109 = vsub.s32 0, %v1108
        %v1110 = vrot.slane %v1081, %v1109
        %v1111 = vlaneseq
        %v1112 = vshrl.u32 %v1111, 7
        %v1113 = vsub.s32 0, %v1112
        %v1114 = vrot.slane %v1095, %v1113
        %v1115 = vlaneseq
        %v1116 = vshrl.u32 %v1115, 7
        %v1117 = vsub.s32 0, %v1116
        %v1118 = vrot.slane %v1103, %v1117
        %v1119 = vlaneseq
        %v1120 = vshrl.u32 %v1119, 7
        %v1121 = vsub.s32 0, %v1120
        %v1122 = vrot.slane %v1105, %v1121
        %v1123 = vlaneseq
        %v1124 = vshrl.u32 %v1123, 7
        %v1125 = vsub.s32 0, %v1124
        %v1126 = vrot.slane %v1088, %v1125
        %v1127 = vlaneseq
        %v1128 = vshrl.u32 %v1127, 7
        %v1129 = vsub.s32 0, %v1128
        %v1130 = vrot.slane %v1102, %v1129
        %v1131 = vlaneseq
        %v1132 = vshrl.u32 %v1131, 7
        %v1133 = vsub.s32 0, %v1132
        %v1134 = vrot.slane %v1104, %v1133
        %v1135 = vlaneseq
        %v1136 = vshrl.u32 %v1135, 7
        %v1137 = vsub.s32 0, %v1136
        %v1138 = vrot.slane %v1106, %v1137
        %v1147 = vmul.f32 %v385, %v1110
        %v1148 = vmul.f32 %v385, %v1114
        %v1149 = vmul.f32 %v385, %v1118
        %v1150 = vmul.f32 %v385, %v1122
        %v1151 = vmul.f32 %v385, %v1126
        %v1152 = vmul.f32 %v385, %v1130
        %v1153 = vmul.f32 %v385, %v1134
        %v1154 = vmul.f32 %v385, %v1138
        %v1155 = vadd.f32 %v1049, %v1147
        %v1156 = vadd.f32 %v1050, %v1148
        %v1157 = vadd.f32 %v1051, %v1149
        %v1158 = vadd.f32 %v1052, %v1150
        %v1159 = vadd.f32 %v1053, %v1151
        %v1160 = vadd.f32 %v1054, %v1152
        %v1161 = vadd.f32 %v1055, %v1153
        %v1162 = vadd.f32 %v1056, %v1154
        %v1163 = vtanh.pop %v1155
        %v1164 = vtanh.pop %v1156
        %v1165 = vtanh.pop %v1157
        %v1166 = vtanh.pop %v1158
        %v1167 = vtanh.pop %v1159
        %v1168 = vtanh.pop %v1160
        %v1169 = vtanh.pop %v1161
        %v1170 = vtanh.pop %v1162
        %v1171 = vpack.c.bf16 %v1163, %v1163
        %v1172 = vpack.c.bf16 %v1164, %v1164
        %v1173 = vpack.c.bf16 %v1165, %v1165
        %v1174 = vpack.c.bf16 %v1166, %v1166
        %v1175 = vpack.c.bf16 %v1167, %v1167
        %v1176 = vpack.c.bf16 %v1168, %v1168
        %v1177 = vpack.c.bf16 %v1169, %v1169
        %v1178 = vpack.c.bf16 %v1170, %v1170
        %s1179 = scalar_lea.vmem %s307, 12 [#allocation3]
        %v1180 = vld [vmem:[%s1179] sm:$0xf]
        %v1181 = vunpack.c.l.bf16 %v1180
        %v1190 = vcombine.low %v1171, %v1172
        %v1191 = vcombine.low %v1173, %v1174
        %v1193 = vunpack.c.l.s4 1983009808
        %v1194 = vunpack.c.0.s8 %v1193
        %v1195 = vlaneseq
        %v1196 = vshrl.u32 %v1195, 7
        %v1197 = vsub.s32 %v1194, %v1196
        %v1198 = vrot.slane %v1190, %v1197
        %v1200 = vunpack.c.l.s4 1983009808
        %v1201 = vunpack.c.0.s8 %v1200
        %v1202 = vlaneseq
        %v1203 = vshrl.u32 %v1202, 7
        %v1204 = vsub.s32 %v1201, %v1203
        %v1205 = vrot.slane %v1191, %v1204
        %v1206 = vcombine.low %v1198, %v1205
        %v1207 = vcombine.low %v1175, %v1176
        %v1208 = vcombine.low %v1177, %v1178
        %v1210 = vunpack.c.l.s4 1983009808
        %v1211 = vunpack.c.0.s8 %v1210
        %v1212 = vlaneseq
        %v1213 = vshrl.u32 %v1212, 7
        %v1214 = vsub.s32 %v1211, %v1213
        %v1215 = vrot.slane %v1207, %v1214
        %v1217 = vunpack.c.l.s4 1983009808
        %v1218 = vunpack.c.0.s8 %v1217
        %v1219 = vlaneseq
        %v1220 = vshrl.u32 %v1219, 7
        %v1221 = vsub.s32 %v1218, %v1220
        %v1222 = vrot.slane %v1208, %v1221
        %v1223 = vcombine.low %v1215, %v1222
        %1226 = vmatprep.subr.bf16.mxu0 0
        %1227 = vmatpush1.bf16.msra.mxu0 %v479
        %1228 = vmatprep.subr.bf16.mxu0 0
        %1229 = vmatpush1.bf16.msra.mxu0 %v478
        %1230 = vmatprep.subr.bf16.mxu0 0
        %1231 = vmatpush1.bf16.msra.mxu0 %v477
        %1232 = vmatprep.subr.bf16.mxu0 0
        %1233 = vmatpush1.bf16.msra.mxu0 %v476
        %1234 = vmatprep.subr.bf16.mxu0 0
        %1235 = vmatpush1.bf16.msra.mxu0 %v475
        %1236 = vmatprep.subr.bf16.mxu0 0
        %1237 = vmatpush1.bf16.msra.mxu0 %v474
        %1238 = vmatprep.subr.bf16.mxu0 0
        %1239 = vmatpush1.bf16.msra.mxu0 %v473
        %1240 = vmatprep.subr.bf16.mxu0 0
        %1241 = vmatpush1.bf16.msra.mxu0 %v472
        %1242 = vmatprep.subr.bf16.mxu0 0
        %1243 = vmatpush2.bf16.msra.mxu0 0
        %1244 = vmatprep.subr.bf16.mxu0 0
        %1245 = vmatpush2.bf16.msra.mxu0 0
        %1246 = vmatprep.subr.bf16.mxu0 0
        %1247 = vmatpush2.bf16.msra.mxu0 0
        %1248 = vmatprep.subr.bf16.mxu0 0
        %1249 = vmatpush2.bf16.msra.mxu0 0
        %1250 = vmatprep.subr.bf16.mxu0 0
        %1251 = vmatpush2.bf16.msra.mxu0 0
        %1252 = vmatprep.subr.bf16.mxu0 0
        %1253 = vmatpush2.bf16.msra.mxu0 0
        %1254 = vmatprep.subr.bf16.mxu0 0
        %1255 = vmatpush2.bf16.msra.mxu0 0
        %1256 = vmatprep.subr.bf16.mxu0 0
        %1257 = vmatpush2.bf16.msra.mxu0 0
        %1258 = vmatprep.mubr.bf16.mxu0 0
        %1259 = vmatmul.mubr.bf16.gmra.mxu0 %v1206
        %v1260 = vpop.f32.mrf.mxu0
        %v1261 = vadd.f32 0.0, %v1260
        %v1262 = vpop.f32.mrf.mxu0
        %v1263 = vpop.f32.mrf.mxu0
        %v1264 = vadd.f32 0.0, %v1263
        %v1265 = vpop.f32.mrf.mxu0
        %1266 = vmatprep.mubr.bf16.mxu0 0
        %1267 = vmatmul.mubr.bf16.gmra.mxu0 %v1223
        %v1268 = vpop.f32.mrf.mxu0
        %v1269 = vadd.f32 0.0, %v1268
        %v1270 = vpop.f32.mrf.mxu0
        %v1271 = vpop.f32.mrf.mxu0
        %v1272 = vadd.f32 0.0, %v1271
        %v1273 = vpop.f32.mrf.mxu0
        %1274 = vdwg.mxu0
        %v1279 = vcombine.high %v1261, %v1261
        %v1280 = vcombine.high %v1264, %v1264
        %v1281 = vcombine.high %v1269, %v1269
        %v1282 = vcombine.high %v1272, %v1272
        %v1287 = vmul.f32 %v383, %v1261
        %v1288 = vmul.f32 %v383, %v1279
        %v1289 = vmul.f32 %v383, %v1264
        %v1290 = vmul.f32 %v383, %v1280
        %v1291 = vmul.f32 %v383, %v1269
        %v1292 = vmul.f32 %v383, %v1281
        %v1293 = vmul.f32 %v383, %v1272
        %v1294 = vmul.f32 %v383, %v1282
        %v1295 = vadd.f32 %v1287, %v384
        %v1296 = vadd.f32 %v1288, %v384
        %v1297 = vadd.f32 %v1289, %v384
        %v1298 = vadd.f32 %v1290, %v384
        %v1299 = vadd.f32 %v1291, %v384
        %v1300 = vadd.f32 %v1292, %v384
        %v1301 = vadd.f32 %v1293, %v384
        %v1302 = vadd.f32 %v1294, %v384
        %v1304 = vcombine.high %v1181, %v1181
        %v1306 = vunpack.c.l.s4 1966171168
        %v1307 = vunpack.c.0.s8 %v1306
        %v1308 = vlaneseq
        %v1309 = vshrl.u32 %v1308, 7
        %v1310 = vsub.s32 %v1307, %v1309
        %v1311 = vrot.slane %v1181, %v1310
        %v1313 = vunpack.c.l.s4 1966171168
        %v1314 = vunpack.c.0.s8 %v1313
        %v1315 = vlaneseq
        %v1316 = vshrl.u32 %v1315, 7
        %v1317 = vsub.s32 %v1314, %v1316
        %v1318 = vrot.slane %v1304, %v1317
        %v1319 = vcombine.high %v1311, %v1311
        %v1320 = vcombine.high %v1318, %v1318
        %v1322 = vunpack.c.l.s4 1966171168
        %v1323 = vunpack.c.0.s8 %v1322
        %v1324 = vlaneseq
        %v1325 = vshrl.u32 %v1324, 7
        %v1326 = vsub.s32 %v1323, %v1325
        %v1327 = vrot.slane %v1311, %v1326
        %v1329 = vunpack.c.l.s4 1966171168
        %v1330 = vunpack.c.0.s8 %v1329
        %v1331 = vlaneseq
        %v1332 = vshrl.u32 %v1331, 7
        %v1333 = vsub.s32 %v1330, %v1332
        %v1334 = vrot.slane %v1318, %v1333
        %v1336 = vunpack.c.l.s4 1966171168
        %v1337 = vunpack.c.0.s8 %v1336
        %v1338 = vlaneseq
        %v1339 = vshrl.u32 %v1338, 7
        %v1340 = vsub.s32 %v1337, %v1339
        %v1341 = vrot.slane %v1319, %v1340
        %v1343 = vunpack.c.l.s4 1966171168
        %v1344 = vunpack.c.0.s8 %v1343
        %v1345 = vlaneseq
        %v1346 = vshrl.u32 %v1345, 7
        %v1347 = vsub.s32 %v1344, %v1346
        %v1348 = vrot.slane %v1320, %v1347
        %v1349 = vcombine.high %v1327, %v1327
        %v1350 = vcombine.high %v1334, %v1334
        %v1351 = vcombine.high %v1341, %v1341
        %v1352 = vcombine.high %v1348, %v1348
        %v1353 = vlaneseq
        %v1354 = vshrl.u32 %v1353, 7
        %v1355 = vsub.s32 0, %v1354
        %v1356 = vrot.slane %v1327, %v1355
        %v1357 = vlaneseq
        %v1358 = vshrl.u32 %v1357, 7
        %v1359 = vsub.s32 0, %v1358
        %v1360 = vrot.slane %v1341, %v1359
        %v1361 = vlaneseq
        %v1362 = vshrl.u32 %v1361, 7
        %v1363 = vsub.s32 0, %v1362
        %v1364 = vrot.slane %v1349, %v1363
        %v1365 = vlaneseq
        %v1366 = vshrl.u32 %v1365, 7
        %v1367 = vsub.s32 0, %v1366
        %v1368 = vrot.slane %v1351, %v1367
        %v1369 = vlaneseq
        %v1370 = vshrl.u32 %v1369, 7
        %v1371 = vsub.s32 0, %v1370
        %v1372 = vrot.slane %v1334, %v1371
        %v1373 = vlaneseq
        %v1374 = vshrl.u32 %v1373, 7
        %v1375 = vsub.s32 0, %v1374
        %v1376 = vrot.slane %v1348, %v1375
        %v1377 = vlaneseq
        %v1378 = vshrl.u32 %v1377, 7
        %v1379 = vsub.s32 0, %v1378
        %v1380 = vrot.slane %v1350, %v1379
        %v1381 = vlaneseq
        %v1382 = vshrl.u32 %v1381, 7
        %v1383 = vsub.s32 0, %v1382
        %v1384 = vrot.slane %v1352, %v1383
        %v1393 = vmul.f32 %v385, %v1356
        %v1394 = vmul.f32 %v385, %v1360
        %v1395 = vmul.f32 %v385, %v1364
        %v1396 = vmul.f32 %v385, %v1368
        %v1397 = vmul.f32 %v385, %v1372
        %v1398 = vmul.f32 %v385, %v1376
        %v1399 = vmul.f32 %v385, %v1380
        %v1400 = vmul.f32 %v385, %v1384
        %v1401 = vadd.f32 %v1295, %v1393
        %v1402 = vadd.f32 %v1296, %v1394
        %v1403 = vadd.f32 %v1297, %v1395
        %v1404 = vadd.f32 %v1298, %v1396
        %v1405 = vadd.f32 %v1299, %v1397
        %v1406 = vadd.f32 %v1300, %v1398
        %v1407 = vadd.f32 %v1301, %v1399
        %v1408 = vadd.f32 %v1302, %v1400
        %v1409 = vtanh.pop %v1401
        %v1410 = vtanh.pop %v1402
        %v1411 = vtanh.pop %v1403
        %v1412 = vtanh.pop %v1404
        %v1413 = vtanh.pop %v1405
        %v1414 = vtanh.pop %v1406
        %v1415 = vtanh.pop %v1407
        %v1416 = vtanh.pop %v1408
        %v1417 = vpack.c.bf16 %v1409, %v1409
        %v1418 = vpack.c.bf16 %v1410, %v1410
        %v1419 = vpack.c.bf16 %v1411, %v1411
        %v1420 = vpack.c.bf16 %v1412, %v1412
        %v1421 = vpack.c.bf16 %v1413, %v1413
        %v1422 = vpack.c.bf16 %v1414, %v1414
        %v1423 = vpack.c.bf16 %v1415, %v1415
        %v1424 = vpack.c.bf16 %v1416, %v1416
        %s1425 = scalar_lea.vmem %s307, 16 [#allocation3]
        %v1426 = vld [vmem:[%s1425] sm:$0xf]
        %v1427 = vunpack.c.l.bf16 %v1426
        %v1436 = vcombine.low %v1417, %v1418
        %v1437 = vcombine.low %v1419, %v1420
        %v1439 = vunpack.c.l.s4 1983009808
        %v1440 = vunpack.c.0.s8 %v1439
        %v1441 = vlaneseq
        %v1442 = vshrl.u32 %v1441, 7
        %v1443 = vsub.s32 %v1440, %v1442
        %v1444 = vrot.slane %v1436, %v1443
        %v1446 = vunpack.c.l.s4 1983009808
        %v1447 = vunpack.c.0.s8 %v1446
        %v1448 = vlaneseq
        %v1449 = vshrl.u32 %v1448, 7
        %v1450 = vsub.s32 %v1447, %v1449
        %v1451 = vrot.slane %v1437, %v1450
        %v1452 = vcombine.low %v1444, %v1451
        %v1453 = vcombine.low %v1421, %v1422
        %v1454 = vcombine.low %v1423, %v1424
        %v1456 = vunpack.c.l.s4 1983009808
        %v1457 = vunpack.c.0.s8 %v1456
        %v1458 = vlaneseq
        %v1459 = vshrl.u32 %v1458, 7
        %v1460 = vsub.s32 %v1457, %v1459
        %v1461 = vrot.slane %v1453, %v1460
        %v1463 = vunpack.c.l.s4 1983009808
        %v1464 = vunpack.c.0.s8 %v1463
        %v1465 = vlaneseq
        %v1466 = vshrl.u32 %v1465, 7
        %v1467 = vsub.s32 %v1464, %v1466
        %v1468 = vrot.slane %v1454, %v1467
        %v1469 = vcombine.low %v1461, %v1468
        %1472 = vmatprep.subr.bf16.mxu0 0
        %1473 = vmatpush1.bf16.msra.mxu0 %v479
        %1474 = vmatprep.subr.bf16.mxu0 0
        %1475 = vmatpush1.bf16.msra.mxu0 %v478
        %1476 = vmatprep.subr.bf16.mxu0 0
        %1477 = vmatpush1.bf16.msra.mxu0 %v477
        %1478 = vmatprep.subr.bf16.mxu0 0
        %1479 = vmatpush1.bf16.msra.mxu0 %v476
        %1480 = vmatprep.subr.bf16.mxu0 0
        %1481 = vmatpush1.bf16.msra.mxu0 %v475
        %1482 = vmatprep.subr.bf16.mxu0 0
        %1483 = vmatpush1.bf16.msra.mxu0 %v474
        %1484 = vmatprep.subr.bf16.mxu0 0
        %1485 = vmatpush1.bf16.msra.mxu0 %v473
        %1486 = vmatprep.subr.bf16.mxu0 0
        %1487 = vmatpush1.bf16.msra.mxu0 %v472
        %1488 = vmatprep.subr.bf16.mxu0 0
        %1489 = vmatpush2.bf16.msra.mxu0 0
        %1490 = vmatprep.subr.bf16.mxu0 0
        %1491 = vmatpush2.bf16.msra.mxu0 0
        %1492 = vmatprep.subr.bf16.mxu0 0
        %1493 = vmatpush2.bf16.msra.mxu0 0
        %1494 = vmatprep.subr.bf16.mxu0 0
        %1495 = vmatpush2.bf16.msra.mxu0 0
        %1496 = vmatprep.subr.bf16.mxu0 0
        %1497 = vmatpush2.bf16.msra.mxu0 0
        %1498 = vmatprep.subr.bf16.mxu0 0
        %1499 = vmatpush2.bf16.msra.mxu0 0
        %1500 = vmatprep.subr.bf16.mxu0 0
        %1501 = vmatpush2.bf16.msra.mxu0 0
        %1502 = vmatprep.subr.bf16.mxu0 0
        %1503 = vmatpush2.bf16.msra.mxu0 0
        %1504 = vmatprep.mubr.bf16.mxu0 0
        %1505 = vmatmul.mubr.bf16.gmra.mxu0 %v1452
        %v1506 = vpop.f32.mrf.mxu0
        %v1507 = vadd.f32 0.0, %v1506
        %v1508 = vpop.f32.mrf.mxu0
        %v1509 = vpop.f32.mrf.mxu0
        %v1510 = vadd.f32 0.0, %v1509
        %v1511 = vpop.f32.mrf.mxu0
        %1512 = vmatprep.mubr.bf16.mxu0 0
        %1513 = vmatmul.mubr.bf16.gmra.mxu0 %v1469
        %v1514 = vpop.f32.mrf.mxu0
        %v1515 = vadd.f32 0.0, %v1514
        %v1516 = vpop.f32.mrf.mxu0
        %v1517 = vpop.f32.mrf.mxu0
        %v1518 = vadd.f32 0.0, %v1517
        %v1519 = vpop.f32.mrf.mxu0
        %1520 = vdwg.mxu0
        %v1525 = vcombine.high %v1507, %v1507
        %v1526 = vcombine.high %v1510, %v1510
        %v1527 = vcombine.high %v1515, %v1515
        %v1528 = vcombine.high %v1518, %v1518
        %v1533 = vmul.f32 %v383, %v1507
        %v1534 = vmul.f32 %v383, %v1525
        %v1535 = vmul.f32 %v383, %v1510
        %v1536 = vmul.f32 %v383, %v1526
        %v1537 = vmul.f32 %v383, %v1515
        %v1538 = vmul.f32 %v383, %v1527
        %v1539 = vmul.f32 %v383, %v1518
        %v1540 = vmul.f32 %v383, %v1528
        %v1541 = vadd.f32 %v1533, %v384
        %v1542 = vadd.f32 %v1534, %v384
        %v1543 = vadd.f32 %v1535, %v384
        %v1544 = vadd.f32 %v1536, %v384
        %v1545 = vadd.f32 %v1537, %v384
        %v1546 = vadd.f32 %v1538, %v384
        %v1547 = vadd.f32 %v1539, %v384
        %v1548 = vadd.f32 %v1540, %v384
        %v1550 = vcombine.high %v1427, %v1427
        %v1552 = vunpack.c.l.s4 1966171168
        %v1553 = vunpack.c.0.s8 %v1552
        %v1554 = vlaneseq
        %v1555 = vshrl.u32 %v1554, 7
        %v1556 = vsub.s32 %v1553, %v1555
        %v1557 = vrot.slane %v1427, %v1556
        %v1559 = vunpack.c.l.s4 1966171168
        %v1560 = vunpack.c.0.s8 %v1559
        %v1561 = vlaneseq
        %v1562 = vshrl.u32 %v1561, 7
        %v1563 = vsub.s32 %v1560, %v1562
        %v1564 = vrot.slane %v1550, %v1563
        %v1565 = vcombine.high %v1557, %v1557
        %v1566 = vcombine.high %v1564, %v1564
        %v1568 = vunpack.c.l.s4 1966171168
        %v1569 = vunpack.c.0.s8 %v1568
        %v1570 = vlaneseq
        %v1571 = vshrl.u32 %v1570, 7
        %v1572 = vsub.s32 %v1569, %v1571
        %v1573 = vrot.slane %v1557, %v1572
        %v1575 = vunpack.c.l.s4 1966171168
        %v1576 = vunpack.c.0.s8 %v1575
        %v1577 = vlaneseq
        %v1578 = vshrl.u32 %v1577, 7
        %v1579 = vsub.s32 %v1576, %v1578
        %v1580 = vrot.slane %v1564, %v1579
        %v1582 = vunpack.c.l.s4 1966171168
        %v1583 = vunpack.c.0.s8 %v1582
        %v1584 = vlaneseq
        %v1585 = vshrl.u32 %v1584, 7
        %v1586 = vsub.s32 %v1583, %v1585
        %v1587 = vrot.slane %v1565, %v1586
        %v1589 = vunpack.c.l.s4 1966171168
        %v1590 = vunpack.c.0.s8 %v1589
        %v1591 = vlaneseq
        %v1592 = vshrl.u32 %v1591, 7
        %v1593 = vsub.s32 %v1590, %v1592
        %v1594 = vrot.slane %v1566, %v1593
        %v1595 = vcombine.high %v1573, %v1573
        %v1596 = vcombine.high %v1580, %v1580
        %v1597 = vcombine.high %v1587, %v1587
        %v1598 = vcombine.high %v1594, %v1594
        %v1599 = vlaneseq
        %v1600 = vshrl.u32 %v1599, 7
        %v1601 = vsub.s32 0, %v1600
        %v1602 = vrot.slane %v1573, %v1601
        %v1603 = vlaneseq
        %v1604 = vshrl.u32 %v1603, 7
        %v1605 = vsub.s32 0, %v1604
        %v1606 = vrot.slane %v1587, %v1605
        %v1607 = vlaneseq
        %v1608 = vshrl.u32 %v1607, 7
        %v1609 = vsub.s32 0, %v1608
        %v1610 = vrot.slane %v1595, %v1609
        %v1611 = vlaneseq
        %v1612 = vshrl.u32 %v1611, 7
        %v1613 = vsub.s32 0, %v1612
        %v1614 = vrot.slane %v1597, %v1613
        %v1615 = vlaneseq
        %v1616 = vshrl.u32 %v1615, 7
        %v1617 = vsub.s32 0, %v1616
        %v1618 = vrot.slane %v1580, %v1617
        %v1619 = vlaneseq
        %v1620 = vshrl.u32 %v1619, 7
        %v1621 = vsub.s32 0, %v1620
        %v1622 = vrot.slane %v1594, %v1621
        %v1623 = vlaneseq
        %v1624 = vshrl.u32 %v1623, 7
        %v1625 = vsub.s32 0, %v1624
        %v1626 = vrot.slane %v1596, %v1625
        %v1627 = vlaneseq
        %v1628 = vshrl.u32 %v1627, 7
        %v1629 = vsub.s32 0, %v1628
        %v1630 = vrot.slane %v1598, %v1629
        %v1639 = vmul.f32 %v385, %v1602
        %v1640 = vmul.f32 %v385, %v1606
        %v1641 = vmul.f32 %v385, %v1610
        %v1642 = vmul.f32 %v385, %v1614
        %v1643 = vmul.f32 %v385, %v1618
        %v1644 = vmul.f32 %v385, %v1622
        %v1645 = vmul.f32 %v385, %v1626
        %v1646 = vmul.f32 %v385, %v1630
        %v1647 = vadd.f32 %v1541, %v1639
        %v1648 = vadd.f32 %v1542, %v1640
        %v1649 = vadd.f32 %v1543, %v1641
        %v1650 = vadd.f32 %v1544, %v1642
        %v1651 = vadd.f32 %v1545, %v1643
        %v1652 = vadd.f32 %v1546, %v1644
        %v1653 = vadd.f32 %v1547, %v1645
        %v1654 = vadd.f32 %v1548, %v1646
        %v1655 = vtanh.pop %v1647
        %v1656 = vtanh.pop %v1648
        %v1657 = vtanh.pop %v1649
        %v1658 = vtanh.pop %v1650
        %v1659 = vtanh.pop %v1651
        %v1660 = vtanh.pop %v1652
        %v1661 = vtanh.pop %v1653
        %v1662 = vtanh.pop %v1654
        %v1663 = vpack.c.bf16 %v1655, %v1655
        %v1664 = vpack.c.bf16 %v1656, %v1656
        %v1665 = vpack.c.bf16 %v1657, %v1657
        %v1666 = vpack.c.bf16 %v1658, %v1658
        %v1667 = vpack.c.bf16 %v1659, %v1659
        %v1668 = vpack.c.bf16 %v1660, %v1660
        %v1669 = vpack.c.bf16 %v1661, %v1661
        %v1670 = vpack.c.bf16 %v1662, %v1662
        %s1671 = scalar_lea.vmem %s307, 20 [#allocation3]
        %v1672 = vld [vmem:[%s1671] sm:$0xf]
        %v1673 = vunpack.c.l.bf16 %v1672
        %v1682 = vcombine.low %v1663, %v1664
        %v1683 = vcombine.low %v1665, %v1666
        %v1685 = vunpack.c.l.s4 1983009808
        %v1686 = vunpack.c.0.s8 %v1685
        %v1687 = vlaneseq
        %v1688 = vshrl.u32 %v1687, 7
        %v1689 = vsub.s32 %v1686, %v1688
        %v1690 = vrot.slane %v1682, %v1689
        %v1692 = vunpack.c.l.s4 1983009808
        %v1693 = vunpack.c.0.s8 %v1692
        %v1694 = vlaneseq
        %v1695 = vshrl.u32 %v1694, 7
        %v1696 = vsub.s32 %v1693, %v1695
        %v1697 = vrot.slane %v1683, %v1696
        %v1698 = vcombine.low %v1690, %v1697
        %v1699 = vcombine.low %v1667, %v1668
        %v1700 = vcombine.low %v1669, %v1670
        %v1702 = vunpack.c.l.s4 1983009808
        %v1703 = vunpack.c.0.s8 %v1702
        %v1704 = vlaneseq
        %v1705 = vshrl.u32 %v1704, 7
        %v1706 = vsub.s32 %v1703, %v1705
        %v1707 = vrot.slane %v1699, %v1706
        %v1709 = vunpack.c.l.s4 1983009808
        %v1710 = vunpack.c.0.s8 %v1709
        %v1711 = vlaneseq
        %v1712 = vshrl.u32 %v1711, 7
        %v1713 = vsub.s32 %v1710, %v1712
        %v1714 = vrot.slane %v1700, %v1713
        %v1715 = vcombine.low %v1707, %v1714
        %1718 = vmatprep.subr.bf16.mxu0 0
        %1719 = vmatpush1.bf16.msra.mxu0 %v479
        %1720 = vmatprep.subr.bf16.mxu0 0
        %1721 = vmatpush1.bf16.msra.mxu0 %v478
        %1722 = vmatprep.subr.bf16.mxu0 0
        %1723 = vmatpush1.bf16.msra.mxu0 %v477
        %1724 = vmatprep.subr.bf16.mxu0 0
        %1725 = vmatpush1.bf16.msra.mxu0 %v476
        %1726 = vmatprep.subr.bf16.mxu0 0
        %1727 = vmatpush1.bf16.msra.mxu0 %v475
        %1728 = vmatprep.subr.bf16.mxu0 0
        %1729 = vmatpush1.bf16.msra.mxu0 %v474
        %1730 = vmatprep.subr.bf16.mxu0 0
        %1731 = vmatpush1.bf16.msra.mxu0 %v473
        %1732 = vmatprep.subr.bf16.mxu0 0
        %1733 = vmatpush1.bf16.msra.mxu0 %v472
        %1734 = vmatprep.subr.bf16.mxu0 0
        %1735 = vmatpush2.bf16.msra.mxu0 0
        %1736 = vmatprep.subr.bf16.mxu0 0
        %1737 = vmatpush2.bf16.msra.mxu0 0
        %1738 = vmatprep.subr.bf16.mxu0 0
        %1739 = vmatpush2.bf16.msra.mxu0 0
        %1740 = vmatprep.subr.bf16.mxu0 0
        %1741 = vmatpush2.bf16.msra.mxu0 0
        %1742 = vmatprep.subr.bf16.mxu0 0
        %1743 = vmatpush2.bf16.msra.mxu0 0
        %1744 = vmatprep.subr.bf16.mxu0 0
        %1745 = vmatpush2.bf16.msra.mxu0 0
        %1746 = vmatprep.subr.bf16.mxu0 0
        %1747 = vmatpush2.bf16.msra.mxu0 0
        %1748 = vmatprep.subr.bf16.mxu0 0
        %1749 = vmatpush2.bf16.msra.mxu0 0
        %1750 = vmatprep.mubr.bf16.mxu0 0
        %1751 = vmatmul.mubr.bf16.gmra.mxu0 %v1698
        %v1752 = vpop.f32.mrf.mxu0
        %v1753 = vadd.f32 0.0, %v1752
        %v1754 = vpop.f32.mrf.mxu0
        %v1755 = vpop.f32.mrf.mxu0
        %v1756 = vadd.f32 0.0, %v1755
        %v1757 = vpop.f32.mrf.mxu0
        %1758 = vmatprep.mubr.bf16.mxu0 0
        %1759 = vmatmul.mubr.bf16.gmra.mxu0 %v1715
        %v1760 = vpop.f32.mrf.mxu0
        %v1761 = vadd.f32 0.0, %v1760
        %v1762 = vpop.f32.mrf.mxu0
        %v1763 = vpop.f32.mrf.mxu0
        %v1764 = vadd.f32 0.0, %v1763
        %v1765 = vpop.f32.mrf.mxu0
        %1766 = vdwg.mxu0
        %v1771 = vcombine.high %v1753, %v1753
        %v1772 = vcombine.high %v1756, %v1756
        %v1773 = vcombine.high %v1761, %v1761
        %v1774 = vcombine.high %v1764, %v1764
        %v1779 = vmul.f32 %v383, %v1753
        %v1780 = vmul.f32 %v383, %v1771
        %v1781 = vmul.f32 %v383, %v1756
        %v1782 = vmul.f32 %v383, %v1772
        %v1783 = vmul.f32 %v383, %v1761
        %v1784 = vmul.f32 %v383, %v1773
        %v1785 = vmul.f32 %v383, %v1764
        %v1786 = vmul.f32 %v383, %v1774
        %v1787 = vadd.f32 %v1779, %v384
        %v1788 = vadd.f32 %v1780, %v384
        %v1789 = vadd.f32 %v1781, %v384
        %v1790 = vadd.f32 %v1782, %v384
        %v1791 = vadd.f32 %v1783, %v384
        %v1792 = vadd.f32 %v1784, %v384
        %v1793 = vadd.f32 %v1785, %v384
        %v1794 = vadd.f32 %v1786, %v384
        %v1796 = vcombine.high %v1673, %v1673
        %v1798 = vunpack.c.l.s4 1966171168
        %v1799 = vunpack.c.0.s8 %v1798
        %v1800 = vlaneseq
        %v1801 = vshrl.u32 %v1800, 7
        %v1802 = vsub.s32 %v1799, %v1801
        %v1803 = vrot.slane %v1673, %v1802
        %v1805 = vunpack.c.l.s4 1966171168
        %v1806 = vunpack.c.0.s8 %v1805
        %v1807 = vlaneseq
        %v1808 = vshrl.u32 %v1807, 7
        %v1809 = vsub.s32 %v1806, %v1808
        %v1810 = vrot.slane %v1796, %v1809
        %v1811 = vcombine.high %v1803, %v1803
        %v1812 = vcombine.high %v1810, %v1810
        %v1814 = vunpack.c.l.s4 1966171168
        %v1815 = vunpack.c.0.s8 %v1814
        %v1816 = vlaneseq
        %v1817 = vshrl.u32 %v1816, 7
        %v1818 = vsub.s32 %v1815, %v1817
        %v1819 = vrot.slane %v1803, %v1818
        %v1821 = vunpack.c.l.s4 1966171168
        %v1822 = vunpack.c.0.s8 %v1821
        %v1823 = vlaneseq
        %v1824 = vshrl.u32 %v1823, 7
        %v1825 = vsub.s32 %v1822, %v1824
        %v1826 = vrot.slane %v1810, %v1825
        %v1828 = vunpack.c.l.s4 1966171168
        %v1829 = vunpack.c.0.s8 %v1828
        %v1830 = vlaneseq
        %v1831 = vshrl.u32 %v1830, 7
        %v1832 = vsub.s32 %v1829, %v1831
        %v1833 = vrot.slane %v1811, %v1832
        %v1835 = vunpack.c.l.s4 1966171168
        %v1836 = vunpack.c.0.s8 %v1835
        %v1837 = vlaneseq
        %v1838 = vshrl.u32 %v1837, 7
        %v1839 = vsub.s32 %v1836, %v1838
        %v1840 = vrot.slane %v1812, %v1839
        %v1841 = vcombine.high %v1819, %v1819
        %v1842 = vcombine.high %v1826, %v1826
        %v1843 = vcombine.high %v1833, %v1833
        %v1844 = vcombine.high %v1840, %v1840
        %v1845 = vlaneseq
        %v1846 = vshrl.u32 %v1845, 7
        %v1847 = vsub.s32 0, %v1846
        %v1848 = vrot.slane %v1819, %v1847
        %v1849 = vlaneseq
        %v1850 = vshrl.u32 %v1849, 7
        %v1851 = vsub.s32 0, %v1850
        %v1852 = vrot.slane %v1833, %v1851
        %v1853 = vlaneseq
        %v1854 = vshrl.u32 %v1853, 7
        %v1855 = vsub.s32 0, %v1854
        %v1856 = vrot.slane %v1841, %v1855
        %v1857 = vlaneseq
        %v1858 = vshrl.u32 %v1857, 7
        %v1859 = vsub.s32 0, %v1858
        %v1860 = vrot.slane %v1843, %v1859
        %v1861 = vlaneseq
        %v1862 = vshrl.u32 %v1861, 7
        %v1863 = vsub.s32 0, %v1862
        %v1864 = vrot.slane %v1826, %v1863
        %v1865 = vlaneseq
        %v1866 = vshrl.u32 %v1865, 7
        %v1867 = vsub.s32 0, %v1866
        %v1868 = vrot.slane %v1840, %v1867
        %v1869 = vlaneseq
        %v1870 = vshrl.u32 %v1869, 7
        %v1871 = vsub.s32 0, %v1870
        %v1872 = vrot.slane %v1842, %v1871
        %v1873 = vlaneseq
        %v1874 = vshrl.u32 %v1873, 7
        %v1875 = vsub.s32 0, %v1874
        %v1876 = vrot.slane %v1844, %v1875
        %v1885 = vmul.f32 %v385, %v1848
        %v1886 = vmul.f32 %v385, %v1852
        %v1887 = vmul.f32 %v385, %v1856
        %v1888 = vmul.f32 %v385, %v1860
        %v1889 = vmul.f32 %v385, %v1864
        %v1890 = vmul.f32 %v385, %v1868
        %v1891 = vmul.f32 %v385, %v1872
        %v1892 = vmul.f32 %v385, %v1876
        %v1893 = vadd.f32 %v1787, %v1885
        %v1894 = vadd.f32 %v1788, %v1886
        %v1895 = vadd.f32 %v1789, %v1887
        %v1896 = vadd.f32 %v1790, %v1888
        %v1897 = vadd.f32 %v1791, %v1889
        %v1898 = vadd.f32 %v1792, %v1890
        %v1899 = vadd.f32 %v1793, %v1891
        %v1900 = vadd.f32 %v1794, %v1892
        %v1901 = vtanh.pop %v1893
        %v1902 = vtanh.pop %v1894
        %v1903 = vtanh.pop %v1895
        %v1904 = vtanh.pop %v1896
        %v1905 = vtanh.pop %v1897
        %v1906 = vtanh.pop %v1898
        %v1907 = vtanh.pop %v1899
        %v1908 = vtanh.pop %v1900
        %v1909 = vpack.c.bf16 %v1901, %v1901
        %v1910 = vpack.c.bf16 %v1902, %v1902
        %v1911 = vpack.c.bf16 %v1903, %v1903
        %v1912 = vpack.c.bf16 %v1904, %v1904
        %v1913 = vpack.c.bf16 %v1905, %v1905
        %v1914 = vpack.c.bf16 %v1906, %v1906
        %v1915 = vpack.c.bf16 %v1907, %v1907
        %v1916 = vpack.c.bf16 %v1908, %v1908
        %s1917 = scalar_lea.vmem %s307, 24 [#allocation3]
        %v1918 = vld [vmem:[%s1917] sm:$0xf]
        %v1919 = vunpack.c.l.bf16 %v1918
        %v1928 = vcombine.low %v1909, %v1910
        %v1929 = vcombine.low %v1911, %v1912
        %v1931 = vunpack.c.l.s4 1983009808
        %v1932 = vunpack.c.0.s8 %v1931
        %v1933 = vlaneseq
        %v1934 = vshrl.u32 %v1933, 7
        %v1935 = vsub.s32 %v1932, %v1934
        %v1936 = vrot.slane %v1928, %v1935
        %v1938 = vunpack.c.l.s4 1983009808
        %v1939 = vunpack.c.0.s8 %v1938
        %v1940 = vlaneseq
        %v1941 = vshrl.u32 %v1940, 7
        %v1942 = vsub.s32 %v1939, %v1941
        %v1943 = vrot.slane %v1929, %v1942
        %v1944 = vcombine.low %v1936, %v1943
        %v1945 = vcombine.low %v1913, %v1914
        %v1946 = vcombine.low %v1915, %v1916
        %v1948 = vunpack.c.l.s4 1983009808
        %v1949 = vunpack.c.0.s8 %v1948
        %v1950 = vlaneseq
        %v1951 = vshrl.u32 %v1950, 7
        %v1952 = vsub.s32 %v1949, %v1951
        %v1953 = vrot.slane %v1945, %v1952
        %v1955 = vunpack.c.l.s4 1983009808
        %v1956 = vunpack.c.0.s8 %v1955
        %v1957 = vlaneseq
        %v1958 = vshrl.u32 %v1957, 7
        %v1959 = vsub.s32 %v1956, %v1958
        %v1960 = vrot.slane %v1946, %v1959
        %v1961 = vcombine.low %v1953, %v1960
        %1964 = vmatprep.subr.bf16.mxu0 0
        %1965 = vmatpush1.bf16.msra.mxu0 %v479
        %1966 = vmatprep.subr.bf16.mxu0 0
        %1967 = vmatpush1.bf16.msra.mxu0 %v478
        %1968 = vmatprep.subr.bf16.mxu0 0
        %1969 = vmatpush1.bf16.msra.mxu0 %v477
        %1970 = vmatprep.subr.bf16.mxu0 0
        %1971 = vmatpush1.bf16.msra.mxu0 %v476
        %1972 = vmatprep.subr.bf16.mxu0 0
        %1973 = vmatpush1.bf16.msra.mxu0 %v475
        %1974 = vmatprep.subr.bf16.mxu0 0
        %1975 = vmatpush1.bf16.msra.mxu0 %v474
        %1976 = vmatprep.subr.bf16.mxu0 0
        %1977 = vmatpush1.bf16.msra.mxu0 %v473
        %1978 = vmatprep.subr.bf16.mxu0 0
        %1979 = vmatpush1.bf16.msra.mxu0 %v472
        %1980 = vmatprep.subr.bf16.mxu0 0
        %1981 = vmatpush2.bf16.msra.mxu0 0
        %1982 = vmatprep.subr.bf16.mxu0 0
        %1983 = vmatpush2.bf16.msra.mxu0 0
        %1984 = vmatprep.subr.bf16.mxu0 0
        %1985 = vmatpush2.bf16.msra.mxu0 0
        %1986 = vmatprep.subr.bf16.mxu0 0
        %1987 = vmatpush2.bf16.msra.mxu0 0
        %1988 = vmatprep.subr.bf16.mxu0 0
        %1989 = vmatpush2.bf16.msra.mxu0 0
        %1990 = vmatprep.subr.bf16.mxu0 0
        %1991 = vmatpush2.bf16.msra.mxu0 0
        %1992 = vmatprep.subr.bf16.mxu0 0
        %1993 = vmatpush2.bf16.msra.mxu0 0
        %1994 = vmatprep.subr.bf16.mxu0 0
        %1995 = vmatpush2.bf16.msra.mxu0 0
        %1996 = vmatprep.mubr.bf16.mxu0 0
        %1997 = vmatmul.mubr.bf16.gmra.mxu0 %v1944
        %v1998 = vpop.f32.mrf.mxu0
        %v1999 = vadd.f32 0.0, %v1998
        %v2000 = vpop.f32.mrf.mxu0
        %v2001 = vpop.f32.mrf.mxu0
        %v2002 = vadd.f32 0.0, %v2001
        %v2003 = vpop.f32.mrf.mxu0
        %2004 = vmatprep.mubr.bf16.mxu0 0
        %2005 = vmatmul.mubr.bf16.gmra.mxu0 %v1961
        %v2006 = vpop.f32.mrf.mxu0
        %v2007 = vadd.f32 0.0, %v2006
        %v2008 = vpop.f32.mrf.mxu0
        %v2009 = vpop.f32.mrf.mxu0
        %v2010 = vadd.f32 0.0, %v2009
        %v2011 = vpop.f32.mrf.mxu0
        %2012 = vdwg.mxu0
        %v2017 = vcombine.high %v1999, %v1999
        %v2018 = vcombine.high %v2002, %v2002
        %v2019 = vcombine.high %v2007, %v2007
        %v2020 = vcombine.high %v2010, %v2010
        %v2025 = vmul.f32 %v383, %v1999
        %v2026 = vmul.f32 %v383, %v2017
        %v2027 = vmul.f32 %v383, %v2002
        %v2028 = vmul.f32 %v383, %v2018
        %v2029 = vmul.f32 %v383, %v2007
        %v2030 = vmul.f32 %v383, %v2019
        %v2031 = vmul.f32 %v383, %v2010
        %v2032 = vmul.f32 %v383, %v2020
        %v2033 = vadd.f32 %v2025, %v384
        %v2034 = vadd.f32 %v2026, %v384
        %v2035 = vadd.f32 %v2027, %v384
        %v2036 = vadd.f32 %v2028, %v384
        %v2037 = vadd.f32 %v2029, %v384
        %v2038 = vadd.f32 %v2030, %v384
        %v2039 = vadd.f32 %v2031, %v384
        %v2040 = vadd.f32 %v2032, %v384
        %v2042 = vcombine.high %v1919, %v1919
        %v2044 = vunpack.c.l.s4 1966171168
        %v2045 = vunpack.c.0.s8 %v2044
        %v2046 = vlaneseq
        %v2047 = vshrl.u32 %v2046, 7
        %v2048 = vsub.s32 %v2045, %v2047
        %v2049 = vrot.slane %v1919, %v2048
        %v2051 = vunpack.c.l.s4 1966171168
        %v2052 = vunpack.c.0.s8 %v2051
        %v2053 = vlaneseq
        %v2054 = vshrl.u32 %v2053, 7
        %v2055 = vsub.s32 %v2052, %v2054
        %v2056 = vrot.slane %v2042, %v2055
        %v2057 = vcombine.high %v2049, %v2049
        %v2058 = vcombine.high %v2056, %v2056
        %v2060 = vunpack.c.l.s4 1966171168
        %v2061 = vunpack.c.0.s8 %v2060
        %v2062 = vlaneseq
        %v2063 = vshrl.u32 %v2062, 7
        %v2064 = vsub.s32 %v2061, %v2063
        %v2065 = vrot.slane %v2049, %v2064
        %v2067 = vunpack.c.l.s4 1966171168
        %v2068 = vunpack.c.0.s8 %v2067
        %v2069 = vlaneseq
        %v2070 = vshrl.u32 %v2069, 7
        %v2071 = vsub.s32 %v2068, %v2070
        %v2072 = vrot.slane %v2056, %v2071
        %v2074 = vunpack.c.l.s4 1966171168
        %v2075 = vunpack.c.0.s8 %v2074
        %v2076 = vlaneseq
        %v2077 = vshrl.u32 %v2076, 7
        %v2078 = vsub.s32 %v2075, %v2077
        %v2079 = vrot.slane %v2057, %v2078
        %v2081 = vunpack.c.l.s4 1966171168
        %v2082 = vunpack.c.0.s8 %v2081
        %v2083 = vlaneseq
        %v2084 = vshrl.u32 %v2083, 7
        %v2085 = vsub.s32 %v2082, %v2084
        %v2086 = vrot.slane %v2058, %v2085
        %v2087 = vcombine.high %v2065, %v2065
        %v2088 = vcombine.high %v2072, %v2072
        %v2089 = vcombine.high %v2079, %v2079
        %v2090 = vcombine.high %v2086, %v2086
        %v2091 = vlaneseq
        %v2092 = vshrl.u32 %v2091, 7
        %v2093 = vsub.s32 0, %v2092
        %v2094 = vrot.slane %v2065, %v2093
        %v2095 = vlaneseq
        %v2096 = vshrl.u32 %v2095, 7
        %v2097 = vsub.s32 0, %v2096
        %v2098 = vrot.slane %v2079, %v2097
        %v2099 = vlaneseq
        %v2100 = vshrl.u32 %v2099, 7
        %v2101 = vsub.s32 0, %v2100
        %v2102 = vrot.slane %v2087, %v2101
        %v2103 = vlaneseq
        %v2104 = vshrl.u32 %v2103, 7
        %v2105 = vsub.s32 0, %v2104
        %v2106 = vrot.slane %v2089, %v2105
        %v2107 = vlaneseq
        %v2108 = vshrl.u32 %v2107, 7
        %v2109 = vsub.s32 0, %v2108
        %v2110 = vrot.slane %v2072, %v2109
        %v2111 = vlaneseq
        %v2112 = vshrl.u32 %v2111, 7
        %v2113 = vsub.s32 0, %v2112
        %v2114 = vrot.slane %v2086, %v2113
        %v2115 = vlaneseq
        %v2116 = vshrl.u32 %v2115, 7
        %v2117 = vsub.s32 0, %v2116
        %v2118 = vrot.slane %v2088, %v2117
        %v2119 = vlaneseq
        %v2120 = vshrl.u32 %v2119, 7
        %v2121 = vsub.s32 0, %v2120
        %v2122 = vrot.slane %v2090, %v2121
        %v2131 = vmul.f32 %v385, %v2094
        %v2132 = vmul.f32 %v385, %v2098
        %v2133 = vmul.f32 %v385, %v2102
        %v2134 = vmul.f32 %v385, %v2106
        %v2135 = vmul.f32 %v385, %v2110
        %v2136 = vmul.f32 %v385, %v2114
        %v2137 = vmul.f32 %v385, %v2118
        %v2138 = vmul.f32 %v385, %v2122
        %v2139 = vadd.f32 %v2033, %v2131
        %v2140 = vadd.f32 %v2034, %v2132
        %v2141 = vadd.f32 %v2035, %v2133
        %v2142 = vadd.f32 %v2036, %v2134
        %v2143 = vadd.f32 %v2037, %v2135
        %v2144 = vadd.f32 %v2038, %v2136
        %v2145 = vadd.f32 %v2039, %v2137
        %v2146 = vadd.f32 %v2040, %v2138
        %v2147 = vtanh.pop %v2139
        %v2148 = vtanh.pop %v2140
        %v2149 = vtanh.pop %v2141
        %v2150 = vtanh.pop %v2142
        %v2151 = vtanh.pop %v2143
        %v2152 = vtanh.pop %v2144
        %v2153 = vtanh.pop %v2145
        %v2154 = vtanh.pop %v2146
        %v2155 = vpack.c.bf16 %v2147, %v2147
        %v2156 = vpack.c.bf16 %v2148, %v2148
        %v2157 = vpack.c.bf16 %v2149, %v2149
        %v2158 = vpack.c.bf16 %v2150, %v2150
        %v2159 = vpack.c.bf16 %v2151, %v2151
        %v2160 = vpack.c.bf16 %v2152, %v2152
        %v2161 = vpack.c.bf16 %v2153, %v2153
        %v2162 = vpack.c.bf16 %v2154, %v2154
        %p2163 = scmp.lt.s32.totalorder %s28, 0
        // Predicated region
        $region69: #{tpu_custom_call.1} parent=47 // pred_check
          %p2164 = pneg %p2163
        $region70: #{tpu_custom_call.1} parent=47 // pred_check_branch
          %2166 = sbr.rel (%p2164) target = $region72
        $region71: #{tpu_custom_call.1} parent=47 // pred_region
          %s2167 = scalar_lea.vmem %s307, 28 [#allocation3]
          %v2168 = vld [vmem:[%s2167] sm:$0xf]
          %v2169 = vunpack.c.l.bf16 %v2168
          %v2178 = vcombine.low %v2155, %v2156
          %v2179 = vcombine.low %v2157, %v2158
          %v2181 = vunpack.c.l.s4 1983009808
          %v2182 = vunpack.c.0.s8 %v2181
          %v2183 = vlaneseq
          %v2184 = vshrl.u32 %v2183, 7
          %v2185 = vsub.s32 %v2182, %v2184
          %v2186 = vrot.slane %v2178, %v2185
          %v2188 = vunpack.c.l.s4 1983009808
          %v2189 = vunpack.c.0.s8 %v2188
          %v2190 = vlaneseq
          %v2191 = vshrl.u32 %v2190, 7
          %v2192 = vsub.s32 %v2189, %v2191
          %v2193 = vrot.slane %v2179, %v2192
          %v2194 = vcombine.low %v2186, %v2193
          %v2195 = vcombine.low %v2159, %v2160
          %v2196 = vcombine.low %v2161, %v2162
          %v2198 = vunpack.c.l.s4 1983009808
          %v2199 = vunpack.c.0.s8 %v2198
          %v2200 = vlaneseq
          %v2201 = vshrl.u32 %v2200, 7
          %v2202 = vsub.s32 %v2199, %v2201
          %v2203 = vrot.slane %v2195, %v2202
          %v2205 = vunpack.c.l.s4 1983009808
          %v2206 = vunpack.c.0.s8 %v2205
          %v2207 = vlaneseq
          %v2208 = vshrl.u32 %v2207, 7
          %v2209 = vsub.s32 %v2206, %v2208
          %v2210 = vrot.slane %v2196, %v2209
          %v2211 = vcombine.low %v2203, %v2210
          %2214 = vmatprep.subr.bf16.mxu0 0
          %2215 = vmatpush1.bf16.msra.mxu0 %v479
          %2216 = vmatprep.subr.bf16.mxu0 0
          %2217 = vmatpush1.bf16.msra.mxu0 %v478
          %2218 = vmatprep.subr.bf16.mxu0 0
          %2219 = vmatpush1.bf16.msra.mxu0 %v477
          %2220 = vmatprep.subr.bf16.mxu0 0
          %2221 = vmatpush1.bf16.msra.mxu0 %v476
          %2222 = vmatprep.subr.bf16.mxu0 0
          %2223 = vmatpush1.bf16.msra.mxu0 %v475
          %2224 = vmatprep.subr.bf16.mxu0 0
          %2225 = vmatpush1.bf16.msra.mxu0 %v474
          %2226 = vmatprep.subr.bf16.mxu0 0
          %2227 = vmatpush1.bf16.msra.mxu0 %v473
          %2228 = vmatprep.subr.bf16.mxu0 0
          %2229 = vmatpush1.bf16.msra.mxu0 %v472
          %2230 = vmatprep.subr.bf16.mxu0 0
          %2231 = vmatpush2.bf16.msra.mxu0 0
          %2232 = vmatprep.subr.bf16.mxu0 0
          %2233 = vmatpush2.bf16.msra.mxu0 0
          %2234 = vmatprep.subr.bf16.mxu0 0
          %2235 = vmatpush2.bf16.msra.mxu0 0
          %2236 = vmatprep.subr.bf16.mxu0 0
          %2237 = vmatpush2.bf16.msra.mxu0 0
          %2238 = vmatprep.subr.bf16.mxu0 0
          %2239 = vmatpush2.bf16.msra.mxu0 0
          %2240 = vmatprep.subr.bf16.mxu0 0
          %2241 = vmatpush2.bf16.msra.mxu0 0
          %2242 = vmatprep.subr.bf16.mxu0 0
          %2243 = vmatpush2.bf16.msra.mxu0 0
          %2244 = vmatprep.subr.bf16.mxu0 0
          %2245 = vmatpush2.bf16.msra.mxu0 0
          %2246 = vmatprep.mubr.bf16.mxu0 0
          %2247 = vmatmul.mubr.bf16.gmra.mxu0 %v2194
          %v2248 = vpop.f32.mrf.mxu0
          %v2249 = vadd.f32 0.0, %v2248
          %v2250 = vpop.f32.mrf.mxu0
          %v2251 = vpop.f32.mrf.mxu0
          %v2252 = vadd.f32 0.0, %v2251
          %v2253 = vpop.f32.mrf.mxu0
          %2254 = vmatprep.mubr.bf16.mxu0 0
          %2255 = vmatmul.mubr.bf16.gmra.mxu0 %v2211
          %v2256 = vpop.f32.mrf.mxu0
          %v2257 = vadd.f32 0.0, %v2256
          %v2258 = vpop.f32.mrf.mxu0
          %v2259 = vpop.f32.mrf.mxu0
          %v2260 = vadd.f32 0.0, %v2259
          %v2261 = vpop.f32.mrf.mxu0
          %2262 = vdwg.mxu0
          %v2267 = vcombine.high %v2249, %v2249
          %v2268 = vcombine.high %v2252, %v2252
          %v2269 = vcombine.high %v2257, %v2257
          %v2270 = vcombine.high %v2260, %v2260
          %v2275 = vmul.f32 %v383, %v2249
          %v2276 = vmul.f32 %v383, %v2267
          %v2277 = vmul.f32 %v383, %v2252
          %v2278 = vmul.f32 %v383, %v2268
          %v2279 = vmul.f32 %v383, %v2257
          %v2280 = vmul.f32 %v383, %v2269
          %v2281 = vmul.f32 %v383, %v2260
          %v2282 = vmul.f32 %v383, %v2270
          %v2283 = vadd.f32 %v2275, %v384
          %v2284 = vadd.f32 %v2276, %v384
          %v2285 = vadd.f32 %v2277, %v384
          %v2286 = vadd.f32 %v2278, %v384
          %v2287 = vadd.f32 %v2279, %v384
          %v2288 = vadd.f32 %v2280, %v384
          %v2289 = vadd.f32 %v2281, %v384
          %v2290 = vadd.f32 %v2282, %v384
          %v2292 = vcombine.high %v2169, %v2169
          %v2294 = vunpack.c.l.s4 1966171168
          %v2295 = vunpack.c.0.s8 %v2294
          %v2296 = vlaneseq
          %v2297 = vshrl.u32 %v2296, 7
          %v2298 = vsub.s32 %v2295, %v2297
          %v2299 = vrot.slane %v2169, %v2298
          %v2301 = vunpack.c.l.s4 1966171168
          %v2302 = vunpack.c.0.s8 %v2301
          %v2303 = vlaneseq
          %v2304 = vshrl.u32 %v2303, 7
          %v2305 = vsub.s32 %v2302, %v2304
          %v2306 = vrot.slane %v2292, %v2305
          %v2307 = vcombine.high %v2299, %v2299
          %v2308 = vcombine.high %v2306, %v2306
          %v2310 = vunpack.c.l.s4 1966171168
          %v2311 = vunpack.c.0.s8 %v2310
          %v2312 = vlaneseq
          %v2313 = vshrl.u32 %v2312, 7
          %v2314 = vsub.s32 %v2311, %v2313
          %v2315 = vrot.slane %v2299, %v2314
          %v2317 = vunpack.c.l.s4 1966171168
          %v2318 = vunpack.c.0.s8 %v2317
          %v2319 = vlaneseq
          %v2320 = vshrl.u32 %v2319, 7
          %v2321 = vsub.s32 %v2318, %v2320
          %v2322 = vrot.slane %v2306, %v2321
          %v2324 = vunpack.c.l.s4 1966171168
          %v2325 = vunpack.c.0.s8 %v2324
          %v2326 = vlaneseq
          %v2327 = vshrl.u32 %v2326, 7
          %v2328 = vsub.s32 %v2325, %v2327
          %v2329 = vrot.slane %v2307, %v2328
          %v2331 = vunpack.c.l.s4 1966171168
          %v2332 = vunpack.c.0.s8 %v2331
          %v2333 = vlaneseq
          %v2334 = vshrl.u32 %v2333, 7
          %v2335 = vsub.s32 %v2332, %v2334
          %v2336 = vrot.slane %v2308, %v2335
          %v2337 = vcombine.high %v2315, %v2315
          %v2338 = vcombine.high %v2322, %v2322
          %v2339 = vcombine.high %v2329, %v2329
          %v2340 = vcombine.high %v2336, %v2336
          %v2341 = vlaneseq
          %v2342 = vshrl.u32 %v2341, 7
          %v2343 = vsub.s32 0, %v2342
          %v2344 = vrot.slane %v2315, %v2343
          %v2345 = vlaneseq
          %v2346 = vshrl.u32 %v2345, 7
          %v2347 = vsub.s32 0, %v2346
          %v2348 = vrot.slane %v2329, %v2347
          %v2349 = vlaneseq
          %v2350 = vshrl.u32 %v2349, 7
          %v2351 = vsub.s32 0, %v2350
          %v2352 = vrot.slane %v2337, %v2351
          %v2353 = vlaneseq
          %v2354 = vshrl.u32 %v2353, 7
          %v2355 = vsub.s32 0, %v2354
          %v2356 = vrot.slane %v2339, %v2355
          %v2357 = vlaneseq
          %v2358 = vshrl.u32 %v2357, 7
          %v2359 = vsub.s32 0, %v2358
          %v2360 = vrot.slane %v2322, %v2359
          %v2361 = vlaneseq
          %v2362 = vshrl.u32 %v2361, 7
          %v2363 = vsub.s32 0, %v2362
          %v2364 = vrot.slane %v2336, %v2363
          %v2365 = vlaneseq
          %v2366 = vshrl.u32 %v2365, 7
          %v2367 = vsub.s32 0, %v2366
          %v2368 = vrot.slane %v2338, %v2367
          %v2369 = vlaneseq
          %v2370 = vshrl.u32 %v2369, 7
          %v2371 = vsub.s32 0, %v2370
          %v2372 = vrot.slane %v2340, %v2371
          %v2381 = vmul.f32 %v385, %v2344
          %v2382 = vmul.f32 %v385, %v2348
          %v2383 = vmul.f32 %v385, %v2352
          %v2384 = vmul.f32 %v385, %v2356
          %v2385 = vmul.f32 %v385, %v2360
          %v2386 = vmul.f32 %v385, %v2364
          %v2387 = vmul.f32 %v385, %v2368
          %v2388 = vmul.f32 %v385, %v2372
          %v2389 = vadd.f32 %v2283, %v2381
          %v2390 = vadd.f32 %v2284, %v2382
          %v2391 = vadd.f32 %v2285, %v2383
          %v2392 = vadd.f32 %v2286, %v2384
          %v2393 = vadd.f32 %v2287, %v2385
          %v2394 = vadd.f32 %v2288, %v2386
          %v2395 = vadd.f32 %v2289, %v2387
          %v2396 = vadd.f32 %v2290, %v2388
          %v2397 = vtanh.pop %v2389
          %v2398 = vtanh.pop %v2390
          %v2399 = vtanh.pop %v2391
          %v2400 = vtanh.pop %v2392
          %v2401 = vtanh.pop %v2393
          %v2402 = vtanh.pop %v2394
          %v2403 = vtanh.pop %v2395
          %v2404 = vtanh.pop %v2396
          %v2405 = vpack.c.bf16 %v2397, %v2397
          %v2406 = vpack.c.bf16 %v2398, %v2398
          %v2407 = vpack.c.bf16 %v2399, %v2399
          %v2408 = vpack.c.bf16 %v2400, %v2400
          %v2409 = vpack.c.bf16 %v2401, %v2401
          %v2410 = vpack.c.bf16 %v2402, %v2402
          %v2411 = vpack.c.bf16 %v2403, %v2403
          %v2412 = vpack.c.bf16 %v2404, %v2404
          %2413 = vst [vmem:[#allocation2] sm:$0x3] %v2405
          %2414 = vst [vmem:[#allocation2 + $0x2] sm:$0x3] %v2406
          %2415 = vst [vmem:[#allocation2 + $0x4] sm:$0x3] %v2407
          %2416 = vst [vmem:[#allocation2 + $0x6] sm:$0x3] %v2408
          %2417 = vst [vmem:[#allocation2 + $0x8] sm:$0x3] %v2409
          %2418 = vst [vmem:[#allocation2 + $0xa] sm:$0x3] %v2410
          %2419 = vst [vmem:[#allocation2 + $0xc] sm:$0x3] %v2411
          %2420 = vst [vmem:[#allocation2 + $0xe] sm:$0x3] %v2412
        $region72: #{tpu_custom_call.1} parent=47 // pred_fallthru
          _
        // Predicated region
        $region73: #{tpu_custom_call.1} parent=47 // pred_check
          %p2421 = pneg %p355
        $region74: #{tpu_custom_call.1} parent=47 // pred_check_branch
          %2423 = sbr.rel (%p2421) target = $region76
        $region75: #{tpu_custom_call.1} parent=47 // pred_region
          %v2424 = vunpack.c.l.bf16 %v2155
          %v2425 = vunpack.c.l.bf16 %v2156
          %v2426 = vunpack.c.l.bf16 %v2157
          %v2427 = vunpack.c.l.bf16 %v2158
          %v2428 = vunpack.c.l.bf16 %v2159
          %v2429 = vunpack.c.l.bf16 %v2160
          %v2430 = vunpack.c.l.bf16 %v2161
          %v2431 = vunpack.c.l.bf16 %v2162
          %v2432 = vld [vmem:[%s5] sm:$0xf]
          %v2433 = vmul.f32 %v2424, %v2432
          %v2434 = vmul.f32 %v2425, %v2432
          %v2435 = vmul.f32 %v2426, %v2432
          %v2436 = vmul.f32 %v2427, %v2432
          %v2437 = vmul.f32 %v2428, %v2432
          %v2438 = vmul.f32 %v2429, %v2432
          %v2439 = vmul.f32 %v2430, %v2432
          %v2440 = vmul.f32 %v2431, %v2432
          %vm2441 = vcmask 1043456
          %v2442 = vsel %vm2441, %v2433, 0.0
          %2443 = vadd.xlane.f32.xlu0 %v2442
          %v2444 = vpop.xlane.xlu0 %2443
          %v2445 = vsel %vm2441, %v2434, 0.0
          %2446 = vadd.xlane.f32.xlu0 %v2445
          %v2447 = vpop.xlane.xlu0 %2446
          %v2448 = vsel %vm2441, %v2435, 0.0
          %2449 = vadd.xlane.f32.xlu0 %v2448
          %v2450 = vpop.xlane.xlu0 %2449
          %v2451 = vsel %vm2441, %v2436, 0.0
          %2452 = vadd.xlane.f32.xlu0 %v2451
          %v2453 = vpop.xlane.xlu0 %2452
          %v2454 = vsel %vm2441, %v2437, 0.0
          %2455 = vadd.xlane.f32.xlu0 %v2454
          %v2456 = vpop.xlane.xlu0 %2455
          %v2457 = vsel %vm2441, %v2438, 0.0
          %2458 = vadd.xlane.f32.xlu0 %v2457
          %v2459 = vpop.xlane.xlu0 %2458
          %v2460 = vsel %vm2441, %v2439, 0.0
          %2461 = vadd.xlane.f32.xlu0 %v2460
          %v2462 = vpop.xlane.xlu0 %2461
          %v2463 = vsel %vm2441, %v2440, 0.0
          %2464 = vadd.xlane.f32.xlu0 %v2463
          %v2465 = vpop.xlane.xlu0 %2464
          %v2466 = vld [vmem:[%s6] sm:$0x1]
          %v2468 = vlaneseq
          %v2469 = vshrl.u32 %v2468, 7
          %v2470 = vsub.s32 0, %v2469
          %v2471 = vrot.slane %v2466, %v2470
          %2473 = vbcast.lane.b32.xlu0 %v2471, 256
          %v2474 = vpop.permute.xlu0 %2473
          %v2476 = vadd.f32 %v2444, %v2474
          %v2477 = vadd.f32 %v2447, %v2474
          %v2478 = vadd.f32 %v2450, %v2474
          %v2479 = vadd.f32 %v2453, %v2474
          %v2480 = vadd.f32 %v2456, %v2474
          %v2481 = vadd.f32 %v2459, %v2474
          %v2482 = vadd.f32 %v2462, %v2474
          %v2483 = vadd.f32 %v2465, %v2474
          %2492 = vset.pattern.permute.xlu0 0
          %2493 = vperm.xlu0 %2492, %v2476
          %v2494 = vpop.permute.xlu0 %2493
          %2495 = vset.pattern.permute.xlu0 0
          %2496 = vperm.xlu0 %2495, %v2477
          %v2497 = vpop.permute.xlu0 %2496
          %2498 = vset.pattern.permute.xlu0 0
          %2499 = vperm.xlu0 %2498, %v2478
          %v2500 = vpop.permute.xlu0 %2499
          %2501 = vset.pattern.permute.xlu0 0
          %2502 = vperm.xlu0 %2501, %v2479
          %v2503 = vpop.permute.xlu0 %2502
          %2504 = vset.pattern.permute.xlu0 0
          %2505 = vperm.xlu0 %2504, %v2480
          %v2506 = vpop.permute.xlu0 %2505
          %2507 = vset.pattern.permute.xlu0 0
          %2508 = vperm.xlu0 %2507, %v2481
          %v2509 = vpop.permute.xlu0 %2508
          %2510 = vset.pattern.permute.xlu0 0
          %2511 = vperm.xlu0 %2510, %v2482
          %v2512 = vpop.permute.xlu0 %2511
          %2513 = vset.pattern.permute.xlu0 0
          %2514 = vperm.xlu0 %2513, %v2483
          %v2515 = vpop.permute.xlu0 %2514
          %v2516 = vlaneseq
          %v2517 = vand.u32 %v2516, 127
          %v2518 = vlaneseq
          %v2519 = vshrl.u32 %v2518, 7
          %v2520 = vsub.s32 %v2517, %v2519
          %v2521 = vrot.slane %v2494, %v2520
          %v2522 = vlaneseq
          %v2523 = vshrl.u32 %v2522, 7
          %v2524 = vsub.s32 %v2517, %v2523
          %v2525 = vrot.slane %v2497, %v2524
          %v2526 = vlaneseq
          %v2527 = vshrl.u32 %v2526, 7
          %v2528 = vsub.s32 %v2517, %v2527
          %v2529 = vrot.slane %v2500, %v2528
          %v2530 = vlaneseq
          %v2531 = vshrl.u32 %v2530, 7
          %v2532 = vsub.s32 %v2517, %v2531
          %v2533 = vrot.slane %v2503, %v2532
          %v2534 = vlaneseq
          %v2535 = vshrl.u32 %v2534, 7
          %v2536 = vsub.s32 %v2517, %v2535
          %v2537 = vrot.slane %v2506, %v2536
          %v2538 = vlaneseq
          %v2539 = vshrl.u32 %v2538, 7
          %v2540 = vsub.s32 %v2517, %v2539
          %v2541 = vrot.slane %v2509, %v2540
          %v2542 = vlaneseq
          %v2543 = vshrl.u32 %v2542, 7
          %v2544 = vsub.s32 %v2517, %v2543
          %v2545 = vrot.slane %v2512, %v2544
          %v2546 = vlaneseq
          %v2547 = vshrl.u32 %v2546, 7
          %v2548 = vsub.s32 %v2517, %v2547
          %v2549 = vrot.slane %v2515, %v2548
          %vm2550 = vcmask 1041409
          %v2551 = vsel %vm2550, %v2525, %v2521
          %vm2552 = vcmask 1042434
          %v2553 = vsel %vm2552, %v2529, %v2551
          %vm2554 = vcmask 1043459
          %v2555 = vsel %vm2554, %v2533, %v2553
          %vm2556 = vcmask 1044484
          %v2557 = vsel %vm2556, %v2537, %v2555
          %vm2558 = vcmask 1045509
          %v2559 = vsel %vm2558, %v2541, %v2557
          %vm2560 = vcmask 1046534
          %v2561 = vsel %vm2560, %v2545, %v2559
          %vm2562 = vcmask 1047559
          %v2563 = vsel %vm2562, %v2549, %v2561
          %vm2565 = vcmask 31744
          %2566 = vst.msk [vmem:[%s353] sm:$0xff] %vm2565, %v2563
        $region76: #{tpu_custom_call.1} parent=47 // pred_fallthru
          _
        %p2567 = scmp.lt.s32.totalorder %s27, 1
        %s2568 = scalar_select %p2567, %s27, 1
        %s2569 = smul.addr %s2568, 8
        %s2570 = scalar_lea.vmem %s7, %s2569
        // Predicated region
        $region77: #{tpu_custom_call.1} parent=47 // pred_check
          %p2571 = pneg %p207
        $region78: #{tpu_custom_call.1} parent=47 // pred_check_branch
          %2573 = sbr.rel (%p2571) target = $region80
        $region79: #{tpu_custom_call.1} parent=47 // pred_region
          _
        $region80: #{tpu_custom_call.1} parent=47 // pred_fallthru
          _
      $region48: #{tpu_custom_call.1} parent=5 // pred_fallthru
        _
      %p2574 = scmp.le.s32.totalorder 2, %s18
      // Predicated region
      $region81: #{tpu_custom_call.1} parent=5 // pred_check
        %p2575 = pneg %p2574
      $region82: #{tpu_custom_call.1} parent=5 // pred_check_branch
        %2577 = sbr.rel (%p2575) target = $region84
      $region83: #{tpu_custom_call.1} parent=5 // pred_region
        %s2578 = ssub.s32 %s18, 2
        // Predicated region
        $region85: #{tpu_custom_call.1} parent=83 // pred_check
          %p2579 = pneg %p213
        $region86: #{tpu_custom_call.1} parent=83 // pred_check_branch
          %2581 = sbr.rel (%p2579) target = $region88
        $region87: #{tpu_custom_call.1} parent=83 // pred_region
          %p2582 = scmp.lt.s32.totalorder %s29, 1
          %s2583 = scalar_select %p2582, %s29, 1
          %s2584 = smul.addr %s2583, 8
          %s2585 = scalar_lea.vmem %s7, %s2584
        $region88: #{tpu_custom_call.1} parent=83 // pred_fallthru
          _
      $region84: #{tpu_custom_call.1} parent=5 // pred_fallthru
        _
    $region6: #{tpu_custom_call.1} parent=1 // loop_footer
      %s22 = sadd.s32 1, %s18
    $region7: #{tpu_custom_call.1} parent=1 // loop_footer_branch
      %17 = sbr.rel target = $region3
    $region8: #{tpu_custom_call.1} parent=1 // loop_exit
      _
    %2586 = vsyncpa [#allocation4], 1
    %s2587 = scalar_lea.sflag [#allocation4], 1
    %2588 = vsyncpa %s2587, 1
    %2589 = vsyncpa [#allocation6], 1
    %2590 = vsyncpa [#allocation9], 1

</llo_original>
